<compile_context>
chip_gen: v7x
topology: tpu7x:2x2x1
jax: 0.10.0
libtpu: 0.0.40
codegen_flags: <defaults>
</compile_context>

<pallas_src>
import numpy as np
import jax
import jax.numpy as jnp
from jax import lax
from jax.experimental import pallas as pl
from jax.experimental.pallas import tpu as pltpu


WINDOW_SIZE = 11
_SIGMA = 1.5


def _gaussian_1d(window_size: int, sigma: float = _SIGMA) -> np.ndarray:
    """1-D Gaussian, matches torch gaussian() (normalized to sum 1)."""
    x = np.arange(window_size, dtype=np.float64)
    g = np.exp(-((x - window_size // 2) ** 2) / (2.0 * sigma ** 2))
    return g / g.sum()


def _toeplitz_valid(n_in: int, window: np.ndarray) -> np.ndarray:
    """(n_in, n_out) banded matrix T with (x @ T)[:, j] = sum_k window[k]*x[:, j+k]."""
    ws = len(window)
    n_out = n_in - ws + 1
    t = np.zeros((n_in, n_out), dtype=np.float32)
    for j in range(n_out):
        t[j:j + ws, j] = window
    return t


def _make_ssim_kernel(block_b: int, H: int, W: int, ws: int):
    Ho, Wo = H - ws + 1, W - ws + 1

    def kernel(l_ref, tw_ref, th_ref, img1_ref, img2_ref, out_ref):
        # l_ref    : SMEM (1,) int32  -- value range L (scalar prefetch)
        # tw_ref   : VMEM (W, Wo) f32 -- banded Gaussian, W pass (right-mul)
        # th_ref   : VMEM (Ho, H) f32 -- banded Gaussian, H pass (left-mul)
        # img*_ref : VMEM (block_b, H, W), original input dtype
        # out_ref  : VMEM (1, 1, Wo) f32 -- lane partial sums of the ssim map
        L = l_ref[0].astype(jnp.float32)
        C1 = (0.01 * L) ** 2
        C2 = (0.03 * L) ** 2

        tw = tw_ref[...]
        th = th_ref[...]

        x1 = img1_ref[...].astype(jnp.float32).reshape(block_b * H, W)
        x2 = img2_ref[...].astype(jnp.float32).reshape(block_b * H, W)

        # 5 planes stacked along rows -> a single large MXU matmul does the
        # 1-D Gaussian along W for every plane of every image in the block.
        planes = jnp.concatenate([x1, x2, x1 * x1, x2 * x2, x1 * x2], axis=0)
        yw = jnp.dot(planes, tw, preferred_element_type=jnp.float32)  # (5*bb*H, Wo)

        acc = None
        for b in range(block_b):
            def hpass(k, _b=b):
                rows = yw[(k * block_b + _b) * H:(k * block_b + _b + 1) * H, :]
                # 1-D Gaussian along H, also on the MXU.
                return jnp.dot(th, rows, preferred_element_type=jnp.float32)  # (Ho, Wo)

            mu1, mu2, e11, e22, e12 = [hpass(k) for k in range(5)]

            mu1_sq = mu1 * mu1
            mu2_sq = mu2 * mu2
            mu1_mu2 = mu1 * mu2
            sigma1_sq = e11 - mu1_sq
            sigma2_sq = e22 - mu2_sq
            sigma12 = e12 - mu1_mu2

            v1 = 2.0 * sigma12 + C2
            v2 = sigma1_sq + sigma2_sq + C2
            num = (2.0 * mu1_mu2 + C1) * v1
            den = (mu1_sq + mu2_sq + C1) * v2

            # EUP approximate reciprocal + one Newton step (~f32 accuracy,
            # cheaper than a full-precision divide on the VPU).
            r = pl.reciprocal(den, approx=True)
            r = r * (2.0 - den * r)
            ssim_map = num * r

            part = jnp.sum(ssim_map, axis=0, keepdims=True)  # (1, Wo) lane vector
            acc = part if acc is None else acc + part

        out_ref[...] = acc.reshape(1, 1, Wo)

    return kernel


def _vmem_capacity_bytes() -> int:
    try:
        return int(pltpu.get_tpu_info().vmem_capacity_bytes)
    except Exception:
        return 128 * 1024 * 1024


def _pick_block_b(B, H, W, in_bytes, vmem_limit_bytes, max_bb=8):
    """Largest divisor of B that fits the budget; prefer >= 2 grid steps (v7x)."""
    # Per-image working set: double-buffered inputs (+ f32 in-kernel copies),
    # 5-plane stack, W-pass output, small H-pass temporaries.
    per_img = H * W * (4 * in_bytes + 16 * 4) + 5 * H * W * 4
    budget = (vmem_limit_bytes * 3) // 5
    cap = max(1, min(max_bb, budget // max(per_img, 1)))
    divisors = [d for d in range(1, B + 1) if B % d == 0 and d <= cap]
    pref = [d for d in divisors if B // d >= 2]   # keep both v7x TCs busy
    if pref:
        return max(pref)
    return max(divisors) if divisors else 1


def ssim_pallas(img1, img2, window_size: int = WINDOW_SIZE, val_range=None,
                block_b=None):
    """SSIM(img1, img2) with size_average=True. NCHW inputs."""
    N, C, H, W = img1.shape
    ws = int(window_size)
    assert H >= ws and W >= ws, "image smaller than window"
    B = N * C
    Ho, Wo = H - ws + 1, W - ws + 1

    # Keep the input dtype through the HBM->VMEM pipe; cast inside the kernel.
    x1 = img1.reshape(B, H, W)
    x2 = img2.reshape(B, H, W)

    # Value range L -> int32 scalar prefetch (SMEM).  Skipped full-image
    # reduction when the caller already knows the range.
    if val_range is None:
        max_val = jnp.where(jnp.max(img1) > 128.0, 255, 1)
        min_val = jnp.where(jnp.min(img1) < -0.5, -1, 0)
        L_arr = jnp.asarray(max_val - min_val, dtype=jnp.int32).reshape(1)
    else:
        L_arr = jnp.asarray([val_range], dtype=jnp.int32)  # typical L: 1/2/255/256

    # Banded (Toeplitz) Gaussian matrices: separable conv -> two MXU matmuls.
    g = _gaussian_1d(ws, _SIGMA)
    t_w = jnp.asarray(_toeplitz_valid(W, g))        # (W, Wo):   X @ T_w
    t_h = jnp.asarray(_toeplitz_valid(H, g).T)      # (Ho, H):   T_h @ X

    # Generation-aware VMEM budget (~48 MiB on v7x, up to 96 MiB on v5e/v6e).
    vmem_cap = _vmem_capacity_bytes()
    vmem_limit = int(min((vmem_cap * 3) // 4, 96 * 1024 * 1024))

    in_bytes = np.dtype(img1.dtype).itemsize
    if block_b is None:
        block_b = _pick_block_b(B, H, W, in_bytes, vmem_limit)
    assert B % block_b == 0
    nb = B // block_b

    kernel = _make_ssim_kernel(block_b, H, W, ws)

    # Advisory cost for the XLA scheduler.
    flops = int(B * (2 * 5 * H * W * Wo + 2 * 5 * Ho * H * Wo + 25 * Ho * Wo))
    bytes_accessed = int(2 * B * H * W * in_bytes + nb * Wo * 4
                         + (W * Wo + Ho * H) * 4)
    cost = pl.CostEstimate(flops=flops, transcendentals=int(B * Ho * Wo),
                           bytes_accessed=bytes_accessed)

    grid_spec = pltpu.PrefetchScalarGridSpec(
        num_scalar_prefetch=1,
        grid=(nb,),
        in_specs=[
            pl.BlockSpec((W, Wo), lambda b, L: (0, 0)),              # T_w (resident)
            pl.BlockSpec((Ho, H), lambda b, L: (0, 0)),              # T_h (resident)
            pl.BlockSpec((block_b, H, W), lambda b, L: (b, 0, 0)),   # img1 block
            pl.BlockSpec((block_b, H, W), lambda b, L: (b, 0, 0)),   # img2 block
        ],
        out_specs=pl.BlockSpec((1, 1, Wo), lambda b, L: (b, 0, 0)),
    )

    partials = pl.pallas_call(
        kernel,
        out_shape=jax.ShapeDtypeStruct((nb, 1, Wo), jnp.float32),
        grid_spec=grid_spec,
        compiler_params=pltpu.CompilerParams(
            dimension_semantics=("parallel",),
            vmem_limit_bytes=vmem_limit,
        ),
        cost_estimate=cost,
    )(L_arr, t_w, t_h, x1, x2)

    return jnp.sum(partials) / float(B * Ho * Wo)


def ssim_reference(img1, img2, window_size: int = WINDOW_SIZE):
    """Pure-JAX reference (mirrors the torch ssim() semantics)."""
    N, C, H, W = img1.shape
    g = jnp.asarray(_gaussian_1d(window_size), dtype=jnp.float32)
    w2d = jnp.outer(g, g)
    kernel = jnp.broadcast_to(w2d, (C, 1, window_size, window_size))

    def dwconv(x):
        return lax.conv_general_dilated(
            x, kernel, window_strides=(1, 1), padding="VALID",
            feature_group_count=C,
            dimension_numbers=("NCHW", "OIHW", "NCHW"),
            precision=lax.Precision.HIGHEST)

    max_val = jnp.where(jnp.max(img1) > 128.0, 255.0, 1.0)
    min_val = jnp.where(jnp.min(img1) < -0.5, -1.0, 0.0)
    Lr = max_val - min_val
    C1 = (0.01 * Lr) ** 2
    C2 = (0.03 * Lr) ** 2

    x1 = img1.astype(jnp.float32)
    x2 = img2.astype(jnp.float32)
    mu1, mu2 = dwconv(x1), dwconv(x2)
    mu1_sq, mu2_sq, mu1_mu2 = mu1 * mu1, mu2 * mu2, mu1 * mu2
    sigma1_sq = dwconv(x1 * x1) - mu1_sq
    sigma2_sq = dwconv(x2 * x2) - mu2_sq
    sigma12 = dwconv(x1 * x2) - mu1_mu2
    v1 = 2.0 * sigma12 + C2
    v2 = sigma1_sq + sigma2_sq + C2
    ssim_map = (2.0 * mu1_mu2 + C1) * v1 / ((mu1_sq + mu2_sq + C1) * v2)
    return jnp.mean(ssim_map)


if __name__ == "__main__":
    key = jax.random.PRNGKey(0)
    k1, k2 = jax.random.split(key)
    # small shapes: batch=2, channels=4, spatial=16 (>= window_size=11)
    img1 = jax.random.normal(k1, (2, 4, 16, 16), dtype=jnp.float32)
    img2 = jax.random.normal(k2, (2, 4, 16, 16), dtype=jnp.float32)

    ssim_fn = jax.jit(ssim_pallas)
    out = jax.block_until_ready(ssim_fn(img1, img2))

    ref = jax.block_until_ready(ssim_reference(img1, img2))
    if not np.allclose(np.asarray(out), np.asarray(ref), rtol=5e-4, atol=5e-5):
        raise AssertionError(f"mismatch: pallas={out} ref={ref}")

    print("KERNEL_OK")
</pallas_src>

<mosaic_0001>
module attributes {stable_mosaic.version = 11 : i64} {
  func.func @kernel(%arg0: i32, %arg1: memref<1xi32, #tpu.memory_space<smem>>, %arg2: memref<16x6xf32, #tpu.memory_space<vmem>>, %arg3: memref<6x16xf32, #tpu.memory_space<vmem>>, %arg4: memref<4x16x16xf32, #tpu.memory_space<vmem>>, %arg5: memref<4x16x16xf32, #tpu.memory_space<vmem>>, %arg6: memref<1x1x6xf32, #tpu.memory_space<vmem>>) attributes {dimension_semantics = [#tpu.dimension_semantics<parallel>], iteration_bounds = array<i64: 2>, scalar_prefetch = 1 : i64, scratch_operands = 0 : i64, tpu.core_type = #tpu.core_type<tc>, window_params = [{pipeline_mode = #tpu.pipeline_mode<synchronous>, transform_indices = @transform_0, window_bounds = array<i64: 16, 6>}, {pipeline_mode = #tpu.pipeline_mode<synchronous>, transform_indices = @transform_1, window_bounds = array<i64: 6, 16>}, {transform_indices = @transform_2, window_bounds = array<i64: 4, 16, 16>}, {transform_indices = @transform_3, window_bounds = array<i64: 4, 16, 16>}, {transform_indices = @transform_4, window_bounds = array<i64: 1, 1, 6>}]} {
    %c0 = arith.constant 0 : index
    %0 = memref.load %arg1[%c0] : memref<1xi32, #tpu.memory_space<smem>>
    %1 = arith.sitofp %0 : i32 to f32
    %cst = arith.constant 0.00999999977 : f32
    %2 = arith.mulf %cst, %1 : f32
    %3 = arith.mulf %2, %2 : f32
    %cst_0 = arith.constant 3.000000e-02 : f32
    %4 = arith.mulf %cst_0, %1 : f32
    %5 = arith.mulf %4, %4 : f32
    %c0_1 = arith.constant 0 : index
    %c0_2 = arith.constant 0 : index
    %6 = vector.load %arg2[%c0_1, %c0_2] : memref<16x6xf32, #tpu.memory_space<vmem>>, vector<16x6xf32>
    %c0_3 = arith.constant 0 : index
    %c0_4 = arith.constant 0 : index
    %7 = vector.load %arg3[%c0_3, %c0_4] : memref<6x16xf32, #tpu.memory_space<vmem>>, vector<6x16xf32>
    %c0_5 = arith.constant 0 : index
    %c0_6 = arith.constant 0 : index
    %c0_7 = arith.constant 0 : index
    %8 = vector.load %arg4[%c0_5, %c0_6, %c0_7] : memref<4x16x16xf32, #tpu.memory_space<vmem>>, vector<4x16x16xf32>
    %9 = vector.shape_cast %8 : vector<4x16x16xf32> to vector<64x16xf32>
    %c0_8 = arith.constant 0 : index
    %c0_9 = arith.constant 0 : index
    %c0_10 = arith.constant 0 : index
    %10 = vector.load %arg5[%c0_8, %c0_9, %c0_10] : memref<4x16x16xf32, #tpu.memory_space<vmem>>, vector<4x16x16xf32>
    %11 = vector.shape_cast %10 : vector<4x16x16xf32> to vector<64x16xf32>
    %12 = arith.mulf %9, %9 : vector<64x16xf32>
    %13 = arith.mulf %11, %11 : vector<64x16xf32>
    %14 = arith.mulf %9, %11 : vector<64x16xf32>
    %15 = tpu.concatenate %9, %11, %12, %13, %14 in 0 : vector<64x16xf32>, vector<64x16xf32>, vector<64x16xf32>, vector<64x16xf32>, vector<64x16xf32> -> vector<320x16xf32>
    %cst_11 = arith.constant dense<0.000000e+00> : vector<320x6xf32>
    %16 = tpu.matmul %15, %6, %cst_11 {dimension_numbers = #tpu.dot_dimension_numbers<[1], [0], [0], [1], [0, 0, 1, 1], [], []>} : vector<320x16xf32>, vector<16x6xf32>, vector<320x6xf32> -> vector<320x6xf32>
    %17 = vector.extract_strided_slice %16 {offsets = [0, 0], sizes = [16, 6], strides = [1, 1]} : vector<320x6xf32> to vector<16x6xf32>
    %cst_12 = arith.constant dense<0.000000e+00> : vector<6x6xf32>
    %18 = tpu.matmul %7, %17, %cst_12 {dimension_numbers = #tpu.dot_dimension_numbers<[1], [0], [0], [1], [0, 0, 1, 1], [], []>} : vector<6x16xf32>, vector<16x6xf32>, vector<6x6xf32> -> vector<6x6xf32>
    %19 = vector.extract_strided_slice %16 {offsets = [64, 0], sizes = [16, 6], strides = [1, 1]} : vector<320x6xf32> to vector<16x6xf32>
    %cst_13 = arith.constant dense<0.000000e+00> : vector<6x6xf32>
    %20 = tpu.matmul %7, %19, %cst_13 {dimension_numbers = #tpu.dot_dimension_numbers<[1], [0], [0], [1], [0, 0, 1, 1], [], []>} : vector<6x16xf32>, vector<16x6xf32>, vector<6x6xf32> -> vector<6x6xf32>
    %21 = vector.extract_strided_slice %16 {offsets = [128, 0], sizes = [16, 6], strides = [1, 1]} : vector<320x6xf32> to vector<16x6xf32>
    %cst_14 = arith.constant dense<0.000000e+00> : vector<6x6xf32>
    %22 = tpu.matmul %7, %21, %cst_14 {dimension_numbers = #tpu.dot_dimension_numbers<[1], [0], [0], [1], [0, 0, 1, 1], [], []>} : vector<6x16xf32>, vector<16x6xf32>, vector<6x6xf32> -> vector<6x6xf32>
    %23 = vector.extract_strided_slice %16 {offsets = [192, 0], sizes = [16, 6], strides = [1, 1]} : vector<320x6xf32> to vector<16x6xf32>
    %cst_15 = arith.constant dense<0.000000e+00> : vector<6x6xf32>
    %24 = tpu.matmul %7, %23, %cst_15 {dimension_numbers = #tpu.dot_dimension_numbers<[1], [0], [0], [1], [0, 0, 1, 1], [], []>} : vector<6x16xf32>, vector<16x6xf32>, vector<6x6xf32> -> vector<6x6xf32>
    %25 = vector.extract_strided_slice %16 {offsets = [256, 0], sizes = [16, 6], strides = [1, 1]} : vector<320x6xf32> to vector<16x6xf32>
    %cst_16 = arith.constant dense<0.000000e+00> : vector<6x6xf32>
    %26 = tpu.matmul %7, %25, %cst_16 {dimension_numbers = #tpu.dot_dimension_numbers<[1], [0], [0], [1], [0, 0, 1, 1], [], []>} : vector<6x16xf32>, vector<16x6xf32>, vector<6x6xf32> -> vector<6x6xf32>
    %27 = arith.mulf %18, %18 : vector<6x6xf32>
    %28 = arith.mulf %20, %20 : vector<6x6xf32>
    %29 = arith.mulf %18, %20 : vector<6x6xf32>
    %30 = arith.subf %22, %27 : vector<6x6xf32>
    %31 = arith.subf %24, %28 : vector<6x6xf32>
    %32 = arith.subf %26, %29 : vector<6x6xf32>
    %cst_17 = arith.constant 2.000000e+00 : f32
    %33 = vector.broadcast %cst_17 : f32 to vector<6x6xf32>
    %34 = arith.mulf %33, %32 : vector<6x6xf32>
    %35 = vector.broadcast %5 : f32 to vector<6x6xf32>
    %36 = arith.addf %34, %35 : vector<6x6xf32>
    %37 = arith.addf %30, %31 : vector<6x6xf32>
    %38 = vector.broadcast %5 : f32 to vector<6x6xf32>
    %39 = arith.addf %37, %38 : vector<6x6xf32>
    %cst_18 = arith.constant 2.000000e+00 : f32
    %40 = vector.broadcast %cst_18 : f32 to vector<6x6xf32>
    %41 = arith.mulf %40, %29 : vector<6x6xf32>
    %42 = vector.broadcast %3 : f32 to vector<6x6xf32>
    %43 = arith.addf %41, %42 : vector<6x6xf32>
    %44 = arith.mulf %43, %36 : vector<6x6xf32>
    %45 = arith.addf %27, %28 : vector<6x6xf32>
    %46 = vector.broadcast %3 : f32 to vector<6x6xf32>
    %47 = arith.addf %45, %46 : vector<6x6xf32>
    %48 = arith.mulf %47, %39 : vector<6x6xf32>
    %49 = tpu.reciprocal %48 {approx = true} : vector<6x6xf32> -> vector<6x6xf32>
    %50 = arith.mulf %48, %49 : vector<6x6xf32>
    %cst_19 = arith.constant 2.000000e+00 : f32
    %51 = vector.broadcast %cst_19 : f32 to vector<6x6xf32>
    %52 = arith.subf %51, %50 : vector<6x6xf32>
    %53 = arith.mulf %49, %52 : vector<6x6xf32>
    %54 = arith.mulf %44, %53 : vector<6x6xf32>
    %cst_20 = arith.constant dense<0.000000e+00> : vector<6xf32>
    %55 = vector.multi_reduction <add>, %54, %cst_20 [0] : vector<6x6xf32> to vector<6xf32>
    %56 = vector.shape_cast %55 : vector<6xf32> to vector<1x6xf32>
    %57 = vector.extract_strided_slice %16 {offsets = [16, 0], sizes = [16, 6], strides = [1, 1]} : vector<320x6xf32> to vector<16x6xf32>
    %cst_21 = arith.constant dense<0.000000e+00> : vector<6x6xf32>
    %58 = tpu.matmul %7, %57, %cst_21 {dimension_numbers = #tpu.dot_dimension_numbers<[1], [0], [0], [1], [0, 0, 1, 1], [], []>} : vector<6x16xf32>, vector<16x6xf32>, vector<6x6xf32> -> vector<6x6xf32>
    %59 = vector.extract_strided_slice %16 {offsets = [80, 0], sizes = [16, 6], strides = [1, 1]} : vector<320x6xf32> to vector<16x6xf32>
    %cst_22 = arith.constant dense<0.000000e+00> : vector<6x6xf32>
    %60 = tpu.matmul %7, %59, %cst_22 {dimension_numbers = #tpu.dot_dimension_numbers<[1], [0], [0], [1], [0, 0, 1, 1], [], []>} : vector<6x16xf32>, vector<16x6xf32>, vector<6x6xf32> -> vector<6x6xf32>
    %61 = vector.extract_strided_slice %16 {offsets = [144, 0], sizes = [16, 6], strides = [1, 1]} : vector<320x6xf32> to vector<16x6xf32>
    %cst_23 = arith.constant dense<0.000000e+00> : vector<6x6xf32>
    %62 = tpu.matmul %7, %61, %cst_23 {dimension_numbers = #tpu.dot_dimension_numbers<[1], [0], [0], [1], [0, 0, 1, 1], [], []>} : vector<6x16xf32>, vector<16x6xf32>, vector<6x6xf32> -> vector<6x6xf32>
    %63 = vector.extract_strided_slice %16 {offsets = [208, 0], sizes = [16, 6], strides = [1, 1]} : vector<320x6xf32> to vector<16x6xf32>
    %cst_24 = arith.constant dense<0.000000e+00> : vector<6x6xf32>
    %64 = tpu.matmul %7, %63, %cst_24 {dimension_numbers = #tpu.dot_dimension_numbers<[1], [0], [0], [1], [0, 0, 1, 1], [], []>} : vector<6x16xf32>, vector<16x6xf32>, vector<6x6xf32> -> vector<6x6xf32>
    %65 = vector.extract_strided_slice %16 {offsets = [272, 0], sizes = [16, 6], strides = [1, 1]} : vector<320x6xf32> to vector<16x6xf32>
    %cst_25 = arith.constant dense<0.000000e+00> : vector<6x6xf32>
    %66 = tpu.matmul %7, %65, %cst_25 {dimension_numbers = #tpu.dot_dimension_numbers<[1], [0], [0], [1], [0, 0, 1, 1], [], []>} : vector<6x16xf32>, vector<16x6xf32>, vector<6x6xf32> -> vector<6x6xf32>
    %67 = arith.mulf %58, %58 : vector<6x6xf32>
    %68 = arith.mulf %60, %60 : vector<6x6xf32>
    %69 = arith.mulf %58, %60 : vector<6x6xf32>
    %70 = arith.subf %62, %67 : vector<6x6xf32>
    %71 = arith.subf %64, %68 : vector<6x6xf32>
    %72 = arith.subf %66, %69 : vector<6x6xf32>
    %cst_26 = arith.constant 2.000000e+00 : f32
    %73 = vector.broadcast %cst_26 : f32 to vector<6x6xf32>
    %74 = arith.mulf %73, %72 : vector<6x6xf32>
    %75 = vector.broadcast %5 : f32 to vector<6x6xf32>
    %76 = arith.addf %74, %75 : vector<6x6xf32>
    %77 = arith.addf %70, %71 : vector<6x6xf32>
    %78 = vector.broadcast %5 : f32 to vector<6x6xf32>
    %79 = arith.addf %77, %78 : vector<6x6xf32>
    %cst_27 = arith.constant 2.000000e+00 : f32
    %80 = vector.broadcast %cst_27 : f32 to vector<6x6xf32>
    %81 = arith.mulf %80, %69 : vector<6x6xf32>
    %82 = vector.broadcast %3 : f32 to vector<6x6xf32>
    %83 = arith.addf %81, %82 : vector<6x6xf32>
    %84 = arith.mulf %83, %76 : vector<6x6xf32>
    %85 = arith.addf %67, %68 : vector<6x6xf32>
    %86 = vector.broadcast %3 : f32 to vector<6x6xf32>
    %87 = arith.addf %85, %86 : vector<6x6xf32>
    %88 = arith.mulf %87, %79 : vector<6x6xf32>
    %89 = tpu.reciprocal %88 {approx = true} : vector<6x6xf32> -> vector<6x6xf32>
    %90 = arith.mulf %88, %89 : vector<6x6xf32>
    %cst_28 = arith.constant 2.000000e+00 : f32
    %91 = vector.broadcast %cst_28 : f32 to vector<6x6xf32>
    %92 = arith.subf %91, %90 : vector<6x6xf32>
    %93 = arith.mulf %89, %92 : vector<6x6xf32>
    %94 = arith.mulf %84, %93 : vector<6x6xf32>
    %cst_29 = arith.constant dense<0.000000e+00> : vector<6xf32>
    %95 = vector.multi_reduction <add>, %94, %cst_29 [0] : vector<6x6xf32> to vector<6xf32>
    %96 = vector.shape_cast %95 : vector<6xf32> to vector<1x6xf32>
    %97 = arith.addf %56, %96 : vector<1x6xf32>
    %98 = vector.extract_strided_slice %16 {offsets = [32, 0], sizes = [16, 6], strides = [1, 1]} : vector<320x6xf32> to vector<16x6xf32>
    %cst_30 = arith.constant dense<0.000000e+00> : vector<6x6xf32>
    %99 = tpu.matmul %7, %98, %cst_30 {dimension_numbers = #tpu.dot_dimension_numbers<[1], [0], [0], [1], [0, 0, 1, 1], [], []>} : vector<6x16xf32>, vector<16x6xf32>, vector<6x6xf32> -> vector<6x6xf32>
    %100 = vector.extract_strided_slice %16 {offsets = [96, 0], sizes = [16, 6], strides = [1, 1]} : vector<320x6xf32> to vector<16x6xf32>
    %cst_31 = arith.constant dense<0.000000e+00> : vector<6x6xf32>
    %101 = tpu.matmul %7, %100, %cst_31 {dimension_numbers = #tpu.dot_dimension_numbers<[1], [0], [0], [1], [0, 0, 1, 1], [], []>} : vector<6x16xf32>, vector<16x6xf32>, vector<6x6xf32> -> vector<6x6xf32>
    %102 = vector.extract_strided_slice %16 {offsets = [160, 0], sizes = [16, 6], strides = [1, 1]} : vector<320x6xf32> to vector<16x6xf32>
    %cst_32 = arith.constant dense<0.000000e+00> : vector<6x6xf32>
    %103 = tpu.matmul %7, %102, %cst_32 {dimension_numbers = #tpu.dot_dimension_numbers<[1], [0], [0], [1], [0, 0, 1, 1], [], []>} : vector<6x16xf32>, vector<16x6xf32>, vector<6x6xf32> -> vector<6x6xf32>
    %104 = vector.extract_strided_slice %16 {offsets = [224, 0], sizes = [16, 6], strides = [1, 1]} : vector<320x6xf32> to vector<16x6xf32>
    %cst_33 = arith.constant dense<0.000000e+00> : vector<6x6xf32>
    %105 = tpu.matmul %7, %104, %cst_33 {dimension_numbers = #tpu.dot_dimension_numbers<[1], [0], [0], [1], [0, 0, 1, 1], [], []>} : vector<6x16xf32>, vector<16x6xf32>, vector<6x6xf32> -> vector<6x6xf32>
    %106 = vector.extract_strided_slice %16 {offsets = [288, 0], sizes = [16, 6], strides = [1, 1]} : vector<320x6xf32> to vector<16x6xf32>
    %cst_34 = arith.constant dense<0.000000e+00> : vector<6x6xf32>
    %107 = tpu.matmul %7, %106, %cst_34 {dimension_numbers = #tpu.dot_dimension_numbers<[1], [0], [0], [1], [0, 0, 1, 1], [], []>} : vector<6x16xf32>, vector<16x6xf32>, vector<6x6xf32> -> vector<6x6xf32>
    %108 = arith.mulf %99, %99 : vector<6x6xf32>
    %109 = arith.mulf %101, %101 : vector<6x6xf32>
    %110 = arith.mulf %99, %101 : vector<6x6xf32>
    %111 = arith.subf %103, %108 : vector<6x6xf32>
    %112 = arith.subf %105, %109 : vector<6x6xf32>
    %113 = arith.subf %107, %110 : vector<6x6xf32>
    %cst_35 = arith.constant 2.000000e+00 : f32
    %114 = vector.broadcast %cst_35 : f32 to vector<6x6xf32>
    %115 = arith.mulf %114, %113 : vector<6x6xf32>
    %116 = vector.broadcast %5 : f32 to vector<6x6xf32>
    %117 = arith.addf %115, %116 : vector<6x6xf32>
    %118 = arith.addf %111, %112 : vector<6x6xf32>
    %119 = vector.broadcast %5 : f32 to vector<6x6xf32>
    %120 = arith.addf %118, %119 : vector<6x6xf32>
    %cst_36 = arith.constant 2.000000e+00 : f32
    %121 = vector.broadcast %cst_36 : f32 to vector<6x6xf32>
    %122 = arith.mulf %121, %110 : vector<6x6xf32>
    %123 = vector.broadcast %3 : f32 to vector<6x6xf32>
    %124 = arith.addf %122, %123 : vector<6x6xf32>
    %125 = arith.mulf %124, %117 : vector<6x6xf32>
    %126 = arith.addf %108, %109 : vector<6x6xf32>
    %127 = vector.broadcast %3 : f32 to vector<6x6xf32>
    %128 = arith.addf %126, %127 : vector<6x6xf32>
    %129 = arith.mulf %128, %120 : vector<6x6xf32>
    %130 = tpu.reciprocal %129 {approx = true} : vector<6x6xf32> -> vector<6x6xf32>
    %131 = arith.mulf %129, %130 : vector<6x6xf32>
    %cst_37 = arith.constant 2.000000e+00 : f32
    %132 = vector.broadcast %cst_37 : f32 to vector<6x6xf32>
    %133 = arith.subf %132, %131 : vector<6x6xf32>
    %134 = arith.mulf %130, %133 : vector<6x6xf32>
    %135 = arith.mulf %125, %134 : vector<6x6xf32>
    %cst_38 = arith.constant dense<0.000000e+00> : vector<6xf32>
    %136 = vector.multi_reduction <add>, %135, %cst_38 [0] : vector<6x6xf32> to vector<6xf32>
    %137 = vector.shape_cast %136 : vector<6xf32> to vector<1x6xf32>
    %138 = arith.addf %97, %137 : vector<1x6xf32>
    %139 = vector.extract_strided_slice %16 {offsets = [48, 0], sizes = [16, 6], strides = [1, 1]} : vector<320x6xf32> to vector<16x6xf32>
    %cst_39 = arith.constant dense<0.000000e+00> : vector<6x6xf32>
    %140 = tpu.matmul %7, %139, %cst_39 {dimension_numbers = #tpu.dot_dimension_numbers<[1], [0], [0], [1], [0, 0, 1, 1], [], []>} : vector<6x16xf32>, vector<16x6xf32>, vector<6x6xf32> -> vector<6x6xf32>
    %141 = vector.extract_strided_slice %16 {offsets = [112, 0], sizes = [16, 6], strides = [1, 1]} : vector<320x6xf32> to vector<16x6xf32>
    %cst_40 = arith.constant dense<0.000000e+00> : vector<6x6xf32>
    %142 = tpu.matmul %7, %141, %cst_40 {dimension_numbers = #tpu.dot_dimension_numbers<[1], [0], [0], [1], [0, 0, 1, 1], [], []>} : vector<6x16xf32>, vector<16x6xf32>, vector<6x6xf32> -> vector<6x6xf32>
    %143 = vector.extract_strided_slice %16 {offsets = [176, 0], sizes = [16, 6], strides = [1, 1]} : vector<320x6xf32> to vector<16x6xf32>
    %cst_41 = arith.constant dense<0.000000e+00> : vector<6x6xf32>
    %144 = tpu.matmul %7, %143, %cst_41 {dimension_numbers = #tpu.dot_dimension_numbers<[1], [0], [0], [1], [0, 0, 1, 1], [], []>} : vector<6x16xf32>, vector<16x6xf32>, vector<6x6xf32> -> vector<6x6xf32>
    %145 = vector.extract_strided_slice %16 {offsets = [240, 0], sizes = [16, 6], strides = [1, 1]} : vector<320x6xf32> to vector<16x6xf32>
    %cst_42 = arith.constant dense<0.000000e+00> : vector<6x6xf32>
    %146 = tpu.matmul %7, %145, %cst_42 {dimension_numbers = #tpu.dot_dimension_numbers<[1], [0], [0], [1], [0, 0, 1, 1], [], []>} : vector<6x16xf32>, vector<16x6xf32>, vector<6x6xf32> -> vector<6x6xf32>
    %147 = vector.extract_strided_slice %16 {offsets = [304, 0], sizes = [16, 6], strides = [1, 1]} : vector<320x6xf32> to vector<16x6xf32>
    %cst_43 = arith.constant dense<0.000000e+00> : vector<6x6xf32>
    %148 = tpu.matmul %7, %147, %cst_43 {dimension_numbers = #tpu.dot_dimension_numbers<[1], [0], [0], [1], [0, 0, 1, 1], [], []>} : vector<6x16xf32>, vector<16x6xf32>, vector<6x6xf32> -> vector<6x6xf32>
    %149 = arith.mulf %140, %140 : vector<6x6xf32>
    %150 = arith.mulf %142, %142 : vector<6x6xf32>
    %151 = arith.mulf %140, %142 : vector<6x6xf32>
    %152 = arith.subf %144, %149 : vector<6x6xf32>
    %153 = arith.subf %146, %150 : vector<6x6xf32>
    %154 = arith.subf %148, %151 : vector<6x6xf32>
    %cst_44 = arith.constant 2.000000e+00 : f32
    %155 = vector.broadcast %cst_44 : f32 to vector<6x6xf32>
    %156 = arith.mulf %155, %154 : vector<6x6xf32>
    %157 = vector.broadcast %5 : f32 to vector<6x6xf32>
    %158 = arith.addf %156, %157 : vector<6x6xf32>
    %159 = arith.addf %152, %153 : vector<6x6xf32>
    %160 = vector.broadcast %5 : f32 to vector<6x6xf32>
    %161 = arith.addf %159, %160 : vector<6x6xf32>
    %cst_45 = arith.constant 2.000000e+00 : f32
    %162 = vector.broadcast %cst_45 : f32 to vector<6x6xf32>
    %163 = arith.mulf %162, %151 : vector<6x6xf32>
    %164 = vector.broadcast %3 : f32 to vector<6x6xf32>
    %165 = arith.addf %163, %164 : vector<6x6xf32>
    %166 = arith.mulf %165, %158 : vector<6x6xf32>
    %167 = arith.addf %149, %150 : vector<6x6xf32>
    %168 = vector.broadcast %3 : f32 to vector<6x6xf32>
    %169 = arith.addf %167, %168 : vector<6x6xf32>
    %170 = arith.mulf %169, %161 : vector<6x6xf32>
    %171 = tpu.reciprocal %170 {approx = true} : vector<6x6xf32> -> vector<6x6xf32>
    %172 = arith.mulf %170, %171 : vector<6x6xf32>
    %cst_46 = arith.constant 2.000000e+00 : f32
    %173 = vector.broadcast %cst_46 : f32 to vector<6x6xf32>
    %174 = arith.subf %173, %172 : vector<6x6xf32>
    %175 = arith.mulf %171, %174 : vector<6x6xf32>
    %176 = arith.mulf %166, %175 : vector<6x6xf32>
    %cst_47 = arith.constant dense<0.000000e+00> : vector<6xf32>
    %177 = vector.multi_reduction <add>, %176, %cst_47 [0] : vector<6x6xf32> to vector<6xf32>
    %178 = vector.shape_cast %177 : vector<6xf32> to vector<1x6xf32>
    %179 = arith.addf %138, %178 : vector<1x6xf32>
    %180 = vector.shape_cast %179 : vector<1x6xf32> to vector<1x1x6xf32>
    %c0_48 = arith.constant 0 : index
    %c0_49 = arith.constant 0 : index
    %c0_50 = arith.constant 0 : index
    %181 = vector.load %arg6[%c0_48, %c0_49, %c0_50] : memref<1x1x6xf32, #tpu.memory_space<vmem>>, vector<1x1x6xf32>
    tpu.vector_store %arg6[%c0_48, %c0_49, %c0_50], %180 {strides = array<i32>} : memref<1x1x6xf32, #tpu.memory_space<vmem>>, vector<1x1x6xf32>,
    return
  }
  func.func @transform_0(%arg0: i32, %arg1: memref<1xi32, #tpu.memory_space<smem>>) -> (i32, i32) {
    %c0_i32 = arith.constant 0 : i32
    %c0_i32_0 = arith.constant 0 : i32
    %c0_i32_1 = arith.constant 0 : i32
    return %c0_i32, %c0_i32_0 : i32, i32
  }
  func.func @transform_1(%arg0: i32, %arg1: memref<1xi32, #tpu.memory_space<smem>>) -> (i32, i32) {
    %c0_i32 = arith.constant 0 : i32
    %c0_i32_0 = arith.constant 0 : i32
    %c0_i32_1 = arith.constant 0 : i32
    return %c0_i32, %c0_i32_0 : i32, i32
  }
  func.func @transform_2(%arg0: i32, %arg1: memref<1xi32, #tpu.memory_space<smem>>) -> (i32, i32, i32) {
    %c0_i32 = arith.constant 0 : i32
    %c0_i32_0 = arith.constant 0 : i32
    %c0_i32_1 = arith.constant 0 : i32
    return %arg0, %c0_i32, %c0_i32_0 : i32, i32, i32
  }
  func.func @transform_3(%arg0: i32, %arg1: memref<1xi32, #tpu.memory_space<smem>>) -> (i32, i32, i32) {
    %c0_i32 = arith.constant 0 : i32
    %c0_i32_0 = arith.constant 0 : i32
    %c0_i32_1 = arith.constant 0 : i32
    return %arg0, %c0_i32, %c0_i32_0 : i32, i32, i32
  }
  func.func @transform_4(%arg0: i32, %arg1: memref<1xi32, #tpu.memory_space<smem>>) -> (i32, i32, i32) {
    %c0_i32 = arith.constant 0 : i32
    %c0_i32_0 = arith.constant 0 : i32
    %c0_i32_1 = arith.constant 0 : i32
    return %arg0, %c0_i32, %c0_i32_0 : i32, i32, i32
  }
}

</mosaic_0001>

<llo_original>
// kernel: ssim_pallas.1
$region0: #{ssim_pallas.1}
  #allocation0 [shape = 'u32[]', space=smem, size = 0x4, offset = 0x4, fixed_abs, tag = 'smem constant byte address 0x4 - core index']
  #allocation1 [shape = 'u32[144,128]{1,0:T(1,128)}', space=vmem, size = 0x12000, scoped, tag = 'internal scratch']
  #allocation2 [shape = 's32[1]{0}', space=sflag, size = 0x4, scoped, tag = 'scoped memory for ssim_pallas.1']
  #allocation3 [shape = 's32[1]{0:T(128)S(6)}', space=smem, size = 0x200, scoped, tag = 'prefetched SMEM operand 0']
  %s0 = inlined_call_operand.<no memory space> [shape: s32[1], index: 0, kind: input, shape index: {}]
  %s1 = inlined_call_operand.hbm [shape: f32[16,6], index: 1, kind: input, shape index: {}]
  %s2 = inlined_call_operand.hbm [shape: f32[6,16], index: 2, kind: input, shape index: {}]
  %s3 = inlined_call_operand.hbm [shape: f32[8,16,16], index: 3, kind: input, shape index: {}]
  %s4 = inlined_call_operand.hbm [shape: f32[8,16,16], index: 4, kind: input, shape index: {}]
  %s5 = inlined_call_operand.hbm [shape: f32[2,1,6], index: 5, kind: output, shape index: {}]
  %s6 = sld [smem:[#allocation0]]
  $region65: #{ssim_pallas.1} parent=0
    _
  %s8 = ssub.s32 1, %s6
  %s9 = scalar_select 0, %s8, %s6
  %10 = sst [smem:[#allocation3]] %s0
  $region1: #{ssim_pallas.1} parent=0
    #allocation4 [shape = 'u8[8192]{0}', space=vmem, size = 0x2000, scoped, tag = 'input window, operand 1, single buffered']
    #allocation5 [shape = 's32[2]{0}', space=sflag, size = 0x8, scoped, tag = 'scoped memory for ssim_pallas.1']
    #allocation6 [shape = 's32[2]{0}', space=sflag, size = 0x8, scoped, tag = 'scoped memory for ssim_pallas.1']
    #allocation7 [shape = 'u8[4096]{0}', space=vmem, size = 0x1000, scoped, tag = 'input window, operand 2, single buffered']
    #allocation8 [shape = 's32[1]{0}', space=sflag, size = 0x4, scoped, tag = 'scoped memory for ssim_pallas.1']
    #allocation9 [shape = 'u8[65536]{0}', space=vmem, size = 0x10000, scoped, tag = 'input window, operand 3']
    #allocation10 [shape = 'u8[65536]{0}', space=vmem, size = 0x10000, scoped, tag = 'input window, operand 4']
    #allocation11 [shape = 'u8[1024]{0}', space=vmem, size = 0x400, scoped, tag = 'output window, operand 0']
    %11 = vsyncpa [#allocation5], 0
    %12 = vsyncpa [#allocation8], 0
    %13 = vsyncpa [#allocation6], 0
    %s14 = scalar_lea.sflag [#allocation6], 1
    %15 = vsyncpa %s14, 0
    loop: start=0, step=1, limit=4
    $region2: #{ssim_pallas.1} parent=1 // loop_pre_header
      _
    $region3: #{ssim_pallas.1} parent=1 // loop_header
      %s17 = sphi 0, %s21
      %p18 = scmp.ge.s32.totalorder %s17, 4
      %s25 = sphi 0, %s25
      %s27 = sphi 0, %s25
      %s28 = sphi 0, %s27
      %s42 = sphi 0, %s28
      %s46 = sphi 0, %s46
      %s48 = sphi 0, %s46
      %s49 = sphi 0, %s48
      %s63 = sphi 0, %s49
      %s69 = sphi 0, %s71
      %s72 = sphi 0, %s69
      %s73 = sphi 0, %s72
      %s89 = sphi 0, %s73
      %s95 = sphi 0, %s97
      %s98 = sphi 0, %s95
      %s99 = sphi 0, %s98
      %s115 = sphi 0, %s99
      %s121 = sphi 0, %s123
      %s124 = sphi 0, %s121
      %s125 = sphi 0, %s124
      %s141 = sphi 0, %s125
    $region4: #{ssim_pallas.1} parent=1 // loop_header_branch
      %20 = sbr.rel (%p18) target = $region8
    $region5: #{ssim_pallas.1} parent=1 // loop_body
      %s22 = ssub.s32 %s17, 1
      %s23 = ssub.s32 %s17, 2
      %s24 = sadd.s32 %s17, 1
      %s26 = sadd.s32 %s25, 1
      %p29 = scmp.eq.s32.totalorder %s17, 1
      %p30 = scmp.ne.s32.totalorder %s25, %s27
      %p31 = scmp.eq.s32.totalorder %s17, 0
      %p32 = por %p30, %p31
      %p33 = scmp.ne.s32.totalorder %s25, %s27
      %p34 = scmp.eq.s32.totalorder %s22, 1
      %p35 = por %p33, %p34
      %p36 = scmp.ne.s32.totalorder %s27, %s28
      %p37 = scmp.eq.s32.totalorder %s22, 0
      %p38 = por %p36, %p37
      %p39 = scmp.ne.s32.totalorder %s27, %s28
      %p40 = scmp.eq.s32.totalorder %s23, 1
      %p41 = por %p39, %p40
      %p43 = scmp.ne.s32.totalorder %s28, %s42
      %p44 = scmp.eq.s32.totalorder %s23, 0
      %p45 = por %p43, %p44
      %s47 = sadd.s32 %s46, 1
      %p50 = scmp.eq.s32.totalorder %s17, 1
      %p51 = scmp.ne.s32.totalorder %s46, %s48
      %p52 = scmp.eq.s32.totalorder %s17, 0
      %p53 = por %p51, %p52
      %p54 = scmp.ne.s32.totalorder %s46, %s48
      %p55 = scmp.eq.s32.totalorder %s22, 1
      %p56 = por %p54, %p55
      %p57 = scmp.ne.s32.totalorder %s48, %s49
      %p58 = scmp.eq.s32.totalorder %s22, 0
      %p59 = por %p57, %p58
      %p60 = scmp.ne.s32.totalorder %s48, %s49
      %p61 = scmp.eq.s32.totalorder %s23, 1
      %p62 = por %p60, %p61
      %p64 = scmp.ne.s32.totalorder %s49, %s63
      %p65 = scmp.eq.s32.totalorder %s23, 0
      %p66 = por %p64, %p65
      %s67 = ssub.s32 %s17, %s24
      %p68 = scmp.eq.s32.totalorder %s67, 0
      %s70 = sadd.s32 %s69, 1
      %s71 = scalar_select %p68, %s69, %s70
      %p74 = pneg %p68
      %p75 = scmp.eq.s32.totalorder %s17, 1
      %p76 = por %p74, %p75
      %p77 = scmp.ne.s32.totalorder %s69, %s72
      %p78 = scmp.eq.s32.totalorder %s17, 0
      %p79 = por %p77, %p78
      %p80 = scmp.ne.s32.totalorder %s69, %s72
      %p81 = scmp.eq.s32.totalorder %s22, 1
      %p82 = por %p80, %p81
      %p83 = scmp.ne.s32.totalorder %s72, %s73
      %p84 = scmp.eq.s32.totalorder %s22, 0
      %p85 = por %p83, %p84
      %p86 = scmp.ne.s32.totalorder %s72, %s73
      %p87 = scmp.eq.s32.totalorder %s23, 1
      %p88 = por %p86, %p87
      %p90 = scmp.ne.s32.totalorder %s73, %s89
      %p91 = scmp.eq.s32.totalorder %s23, 0
      %p92 = por %p90, %p91
      %s93 = ssub.s32 %s17, %s24
      %p94 = scmp.eq.s32.totalorder %s93, 0
      %s96 = sadd.s32 %s95, 1
      %s97 = scalar_select %p94, %s95, %s96
      %p100 = pneg %p94
      %p101 = scmp.eq.s32.totalorder %s17, 1
      %p102 = por %p100, %p101
      %p103 = scmp.ne.s32.totalorder %s95, %s98
      %p104 = scmp.eq.s32.totalorder %s17, 0
      %p105 = por %p103, %p104
      %p106 = scmp.ne.s32.totalorder %s95, %s98
      %p107 = scmp.eq.s32.totalorder %s22, 1
      %p108 = por %p106, %p107
      %p109 = scmp.ne.s32.totalorder %s98, %s99
      %p110 = scmp.eq.s32.totalorder %s22, 0
      %p111 = por %p109, %p110
      %p112 = scmp.ne.s32.totalorder %s98, %s99
      %p113 = scmp.eq.s32.totalorder %s23, 1
      %p114 = por %p112, %p113
      %p116 = scmp.ne.s32.totalorder %s99, %s115
      %p117 = scmp.eq.s32.totalorder %s23, 0
      %p118 = por %p116, %p117
      %s119 = ssub.s32 %s17, %s24
      %p120 = scmp.eq.s32.totalorder %s119, 0
      %s122 = sadd.s32 %s121, 1
      %s123 = scalar_select %p120, %s121, %s122
      %p126 = pneg %p120
      %p127 = scmp.eq.s32.totalorder %s17, 1
      %p128 = por %p126, %p127
      %p129 = scmp.ne.s32.totalorder %s121, %s124
      %p130 = scmp.eq.s32.totalorder %s17, 0
      %p131 = por %p129, %p130
      %p132 = scmp.ne.s32.totalorder %s121, %s124
      %p133 = scmp.eq.s32.totalorder %s22, 1
      %p134 = por %p132, %p133
      %p135 = scmp.ne.s32.totalorder %s124, %s125
      %p136 = scmp.eq.s32.totalorder %s22, 0
      %p137 = por %p135, %p136
      %p138 = scmp.ne.s32.totalorder %s124, %s125
      %p139 = scmp.eq.s32.totalorder %s23, 1
      %p140 = por %p138, %p139
      %p142 = scmp.ne.s32.totalorder %s125, %s141
      %p143 = scmp.eq.s32.totalorder %s23, 0
      %p144 = por %p142, %p143
      %p145 = scmp.le.s32.totalorder 1, %s17
      %p146 = scmp.lt.s32.totalorder %s17, 3
      %p147 = pnand %p145, %p146
      %p148 = pneg %p147
      // Predicated region
      $region9: #{ssim_pallas.1} parent=5 // pred_check
        _
      $region10: #{ssim_pallas.1} parent=5 // pred_check_branch
        %150 = sbr.rel (%p147) target = $region12
      $region11: #{ssim_pallas.1} parent=5 // pred_region
        %s151 = ssub.s32 %s17, 1
        // Predicated region
        $region13: #{ssim_pallas.1} parent=11 // pred_check
          %p152 = pneg %p38
        $region14: #{ssim_pallas.1} parent=11 // pred_check_branch
          %154 = sbr.rel (%p152) target = $region16
        $region15: #{ssim_pallas.1} parent=11 // pred_region
          %s156 = ssub.s32 256, 256
          %157 = vsyncadd [#allocation5], %s156
          %s158 = sshll.u32 [#allocation4], 4
          %s159 = int_to_ptr.vmem [resolvable:$true] %s158
          %164 = dma.hbm_to_vmem [thread:$0]  %s1, 256, %s159, [#allocation5], 128, 128, 8
        $region16: #{ssim_pallas.1} parent=11 // pred_fallthru
          _
        // Predicated region
        $region17: #{ssim_pallas.1} parent=11 // pred_check
          %p165 = pneg %p59
        $region18: #{ssim_pallas.1} parent=11 // pred_check_branch
          %167 = sbr.rel (%p165) target = $region20
        $region19: #{ssim_pallas.1} parent=11 // pred_region
          %s169 = ssub.s32 128, 128
          %170 = vsyncadd [#allocation8], %s169
          %s172 = sshll.u32 [#allocation7], 4
          %s173 = int_to_ptr.vmem [resolvable:$true] %s172
          %175 = dma.hbm_to_vmem [thread:$0]  %s2, 128, %s173, [#allocation8]
        $region20: #{ssim_pallas.1} parent=11 // pred_fallthru
          _
      $region12: #{ssim_pallas.1} parent=5 // pred_fallthru
        _
      %p176 = scmp.lt.s32.totalorder %s17, 2
      // Predicated region
      $region21: #{ssim_pallas.1} parent=5 // pred_check
        %p177 = pneg %p176
      $region22: #{ssim_pallas.1} parent=5 // pred_check_branch
        %179 = sbr.rel (%p177) target = $region24
      $region23: #{ssim_pallas.1} parent=5 // pred_region
        // Predicated region
        $region25: #{ssim_pallas.1} parent=23 // pred_check
          %p180 = pneg %p79
        $region26: #{ssim_pallas.1} parent=23 // pred_check_branch
          %182 = sbr.rel (%p180) target = $region28
        $region27: #{ssim_pallas.1} parent=23 // pred_region
          %s183 = sand.u32 %s17, 1
          %s184 = scalar_lea.sflag [#allocation5], %s183
          %s185 = sand.u32 %s69, 1
          %s186 = smul.addr %s185, 64
          %s187 = scalar_lea.vmem [#allocation9], %s186
          %s188 = smul.u32 4, %s17
          %s190 = ssub.s32 1024, 1024
          %191 = vsyncadd %s184, %s190
          %s192 = smul.addr %s188, 2
          %s193 = smul.addr %s192, 128
          %s194 = scalar_lea.hbm %s3, %s193
          %s195 = sshll.u32 %s187, 4
          %s196 = int_to_ptr.vmem [resolvable:$true] %s195
          %201 = dma.hbm_to_vmem [thread:$0]  %s194, 1024, %s196, %s184, 128, 128, 8
        $region28: #{ssim_pallas.1} parent=23 // pred_fallthru
          _
        // Predicated region
        $region29: #{ssim_pallas.1} parent=23 // pred_check
          %p202 = pneg %p105
        $region30: #{ssim_pallas.1} parent=23 // pred_check_branch
          %204 = sbr.rel (%p202) target = $region32
        $region31: #{ssim_pallas.1} parent=23 // pred_region
          %s205 = sand.u32 %s17, 1
          %s206 = scalar_lea.sflag [#allocation5], %s205
          %s207 = sand.u32 %s95, 1
          %s208 = smul.addr %s207, 64
          %s209 = scalar_lea.vmem [#allocation10], %s208
          %s210 = smul.u32 4, %s17
          %s212 = ssub.s32 1024, 1024
          %213 = vsyncadd %s206, %s212
          %s214 = smul.addr %s210, 2
          %s215 = smul.addr %s214, 128
          %s216 = scalar_lea.hbm %s4, %s215
          %s217 = sshll.u32 %s209, 4
          %s218 = int_to_ptr.vmem [resolvable:$true] %s217
          %223 = dma.hbm_to_vmem [thread:$0]  %s216, 1024, %s218, %s206, 128, 128, 8
        $region32: #{ssim_pallas.1} parent=23 // pred_fallthru
          _
      $region24: #{ssim_pallas.1} parent=5 // pred_fallthru
        _
      %p224 = scmp.le.s32.totalorder 1, %s17
      %p225 = scmp.lt.s32.totalorder %s17, 3
      %p226 = pnand %p224, %p225
      %p227 = pneg %p226
      // Predicated region
      $region33: #{ssim_pallas.1} parent=5 // pred_check
        _
      $region34: #{ssim_pallas.1} parent=5 // pred_check_branch
        %229 = sbr.rel (%p226) target = $region36
      $region35: #{ssim_pallas.1} parent=5 // pred_region
        %s230 = ssub.s32 %s17, 1
        // Predicated region
        $region37: #{ssim_pallas.1} parent=35 // pred_check
          %p231 = pneg %p38
        $region38: #{ssim_pallas.1} parent=35 // pred_check_branch
          %233 = sbr.rel (%p231) target = $region40
        $region39: #{ssim_pallas.1} parent=35 // pred_region
          %234 = dma.done [#allocation5], 256
        $region40: #{ssim_pallas.1} parent=35 // pred_fallthru
          _
        // Predicated region
        $region41: #{ssim_pallas.1} parent=35 // pred_check
          %p235 = pneg %p59
        $region42: #{ssim_pallas.1} parent=35 // pred_check_branch
          %237 = sbr.rel (%p235) target = $region44
        $region43: #{ssim_pallas.1} parent=35 // pred_region
          %238 = dma.done [#allocation8], 128
        $region44: #{ssim_pallas.1} parent=35 // pred_fallthru
          _
        %s239 = sand.u32 %s22, 1
        %s240 = scalar_lea.sflag [#allocation5], %s239
        %s241 = sand.u32 %s72, 1
        %s242 = smul.addr %s241, 64
        %s243 = scalar_lea.vmem [#allocation9], %s242
        // Predicated region
        $region45: #{ssim_pallas.1} parent=35 // pred_check
          %p244 = pneg %p85
        $region46: #{ssim_pallas.1} parent=35 // pred_check_branch
          %246 = sbr.rel (%p244) target = $region48
        $region47: #{ssim_pallas.1} parent=35 // pred_region
          %247 = dma.done %s240, 1024
        $region48: #{ssim_pallas.1} parent=35 // pred_fallthru
          _
        %s248 = sand.u32 %s22, 1
        %s249 = scalar_lea.sflag [#allocation5], %s248
        %s250 = sand.u32 %s98, 1
        %s251 = smul.addr %s250, 64
        %s252 = scalar_lea.vmem [#allocation10], %s251
        // Predicated region
        $region49: #{ssim_pallas.1} parent=35 // pred_check
          %p253 = pneg %p111
        $region50: #{ssim_pallas.1} parent=35 // pred_check_branch
          %255 = sbr.rel (%p253) target = $region52
        $region51: #{ssim_pallas.1} parent=35 // pred_region
          %256 = dma.done %s249, 1024
        $region52: #{ssim_pallas.1} parent=35 // pred_fallthru
          _
        %p257 = pneg %p38
        %p258 = pneg %p35
        %p259 = pneg %p59
        %p260 = pneg %p56
        %s261 = sand.u32 %s22, 1
        %s262 = scalar_lea.sflag [#allocation5], %s261
        %s263 = sand.u32 %s72, 1
        %s264 = smul.addr %s263, 64
        %s265 = scalar_lea.vmem [#allocation9], %s264
        %p266 = pneg %p85
        %p267 = pneg %p82
        %s268 = sand.u32 %s22, 1
        %s269 = scalar_lea.sflag [#allocation5], %s268
        %s270 = sand.u32 %s98, 1
        %s271 = smul.addr %s270, 64
        %s272 = scalar_lea.vmem [#allocation10], %s271
        %p273 = pneg %p111
        %p274 = pneg %p108
        %p275 = pneg %p137
        %p276 = pneg %p134
        %s277 = sand.u32 %s124, 1
        %s278 = scalar_lea.sflag [#allocation6], %s277
        %s279 = sand.u32 %s124, 1
        %s280 = scalar_lea.vmem [#allocation11], %s279
        %s281 = smul.u32 4, %s22
        %s282 = smul.u32 4, %s22
        %s283 = sld [smem:[#allocation3]]
        %s284 = scvt.s32.f32 %s283
        %s285 = smul.f32 %s284, 0.01
        %s286 = smul.f32 %s285, %s285
        %s287 = smul.f32 %s284, 0.03
        %s288 = smul.f32 %s287, %s287
        %v289 = vld [vmem:[#allocation4] sm:$0xff]
        %v290 = vld [vmem:[#allocation4 + $0x8] sm:$0xff]
        %v291 = vld [vmem:[#allocation7] sm:$0x3f]
        %v292 = vld [vmem:[%s243] sm:$0xff]
        %v293 = vld [vmem:[%s243 + $0x8] sm:$0xff]
        %v294 = vld [vmem:[%s243 + $0x10] sm:$0xff]
        %v295 = vld [vmem:[%s243 + $0x18] sm:$0xff]
        %v296 = vld [vmem:[%s243 + $0x20] sm:$0xff]
        %v297 = vld [vmem:[%s243 + $0x28] sm:$0xff]
        %v298 = vld [vmem:[%s243 + $0x30] sm:$0xff]
        %v299 = vld [vmem:[%s243 + $0x38] sm:$0xff]
        %v300 = vld [vmem:[%s252] sm:$0xff]
        %v301 = vld [vmem:[%s252 + $0x8] sm:$0xff]
        %v302 = vld [vmem:[%s252 + $0x10] sm:$0xff]
        %v303 = vld [vmem:[%s252 + $0x18] sm:$0xff]
        %v304 = vld [vmem:[%s252 + $0x20] sm:$0xff]
        %v305 = vld [vmem:[%s252 + $0x28] sm:$0xff]
        %v306 = vld [vmem:[%s252 + $0x30] sm:$0xff]
        %v307 = vld [vmem:[%s252 + $0x38] sm:$0xff]
        %v308 = vmul.f32 %v292, %v292
        %v309 = vmul.f32 %v293, %v293
        %v310 = vmul.f32 %v294, %v294
        %v311 = vmul.f32 %v295, %v295
        %v312 = vmul.f32 %v296, %v296
        %v313 = vmul.f32 %v297, %v297
        %v314 = vmul.f32 %v298, %v298
        %v315 = vmul.f32 %v299, %v299
        %v316 = vmul.f32 %v300, %v300
        %v317 = vmul.f32 %v301, %v301
        %v318 = vmul.f32 %v302, %v302
        %v319 = vmul.f32 %v303, %v303
        %v320 = vmul.f32 %v304, %v304
        %v321 = vmul.f32 %v305, %v305
        %v322 = vmul.f32 %v306, %v306
        %v323 = vmul.f32 %v307, %v307
        %v324 = vmul.f32 %v292, %v300
        %v325 = vmul.f32 %v293, %v301
        %v326 = vmul.f32 %v294, %v302
        %v327 = vmul.f32 %v295, %v303
        %v328 = vmul.f32 %v296, %v304
        %v329 = vmul.f32 %v297, %v305
        %v330 = vmul.f32 %v298, %v306
        %v331 = vmul.f32 %v299, %v307
        %vm332 = vcmask 130048
        %v334 = vsel %vm332, %v292, 0
        %v337 = vsel %vm332, %v293, 0
        %v340 = vsel %vm332, %v294, 0
        %v343 = vsel %vm332, %v295, 0
        %v346 = vsel %vm332, %v296, 0
        %v349 = vsel %vm332, %v297, 0
        %v352 = vsel %vm332, %v298, 0
        %v355 = vsel %vm332, %v299, 0
        %v358 = vsel %vm332, %v300, 0
        %v361 = vsel %vm332, %v301, 0
        %v364 = vsel %vm332, %v302, 0
        %v367 = vsel %vm332, %v303, 0
        %v370 = vsel %vm332, %v304, 0
        %v373 = vsel %vm332, %v305, 0
        %v376 = vsel %vm332, %v306, 0
        %v379 = vsel %vm332, %v307, 0
        %v382 = vsel %vm332, %v308, 0
        %v385 = vsel %vm332, %v309, 0
        %v388 = vsel %vm332, %v310, 0
        %v391 = vsel %vm332, %v311, 0
        %v394 = vsel %vm332, %v312, 0
        %v397 = vsel %vm332, %v313, 0
        %v400 = vsel %vm332, %v314, 0
        %v403 = vsel %vm332, %v315, 0
        %v406 = vsel %vm332, %v316, 0
        %v409 = vsel %vm332, %v317, 0
        %v412 = vsel %vm332, %v318, 0
        %v415 = vsel %vm332, %v319, 0
        %v418 = vsel %vm332, %v320, 0
        %v421 = vsel %vm332, %v321, 0
        %v424 = vsel %vm332, %v322, 0
        %v427 = vsel %vm332, %v323, 0
        %v430 = vsel %vm332, %v324, 0
        %v433 = vsel %vm332, %v325, 0
        %v436 = vsel %vm332, %v326, 0
        %v439 = vsel %vm332, %v327, 0
        %v442 = vsel %vm332, %v328, 0
        %v445 = vsel %vm332, %v329, 0
        %v448 = vsel %vm332, %v330, 0
        %v451 = vsel %vm332, %v331, 0
        %453 = vmatprep.subr.mxu0 0.0
        %454 = vmatpush1.msra.mxu0 %v289
        %455 = vmatprep.subr.mxu0 0.0
        %456 = vmatpush1.msra.mxu0 %v290
        %457 = vmatprep.subr.mxu0 0.0
        %458 = vmatpush1.msra.mxu0 0.0
        %459 = vmatprep.subr.mxu0 0.0
        %460 = vmatpush1.msra.mxu0 0.0
        %461 = vmatprep.subr.mxu0 0.0
        %462 = vmatpush1.msra.mxu0 0.0
        %463 = vmatprep.subr.mxu0 0.0
        %464 = vmatpush1.msra.mxu0 0.0
        %465 = vmatprep.subr.mxu0 0.0
        %466 = vmatpush1.msra.mxu0 0.0
        %467 = vmatprep.subr.mxu0 0.0
        %468 = vmatpush1.msra.mxu0 0.0
        %469 = vmatprep.subr.mxu0 0.0
        %470 = vmatpush1.msra.mxu0 0.0
        %471 = vmatprep.subr.mxu0 0.0
        %472 = vmatpush1.msra.mxu0 0.0
        %473 = vmatprep.subr.mxu0 0.0
        %474 = vmatpush1.msra.mxu0 0.0
        %475 = vmatprep.subr.mxu0 0.0
        %476 = vmatpush1.msra.mxu0 0.0
        %477 = vmatprep.subr.mxu0 0.0
        %478 = vmatpush1.msra.mxu0 0.0
        %479 = vmatprep.subr.mxu0 0.0
        %480 = vmatpush1.msra.mxu0 0.0
        %481 = vmatprep.subr.mxu0 0.0
        %482 = vmatpush1.msra.mxu0 0.0
        %483 = vmatprep.subr.mxu0 0.0
        %484 = vmatpush1.msra.mxu0 0.0
        %485 = vmatprep.subr.mxu0 0.0
        %486 = vmatpush1.msra.mxu0 0.0
        %487 = vmatprep.subr.mxu0 0.0
        %488 = vmatpush1.msra.mxu0 0.0
        %489 = vmatprep.subr.mxu0 0.0
        %490 = vmatpush1.msra.mxu0 0.0
        %491 = vmatprep.subr.mxu0 0.0
        %492 = vmatpush1.msra.mxu0 0.0
        %493 = vmatprep.subr.mxu0 0.0
        %494 = vmatpush1.msra.mxu0 0.0
        %495 = vmatprep.subr.mxu0 0.0
        %496 = vmatpush1.msra.mxu0 0.0
        %497 = vmatprep.subr.mxu0 0.0
        %498 = vmatpush1.msra.mxu0 0.0
        %499 = vmatprep.subr.mxu0 0.0
        %500 = vmatpush1.msra.mxu0 0.0
        %501 = vmatprep.subr.mxu0 0.0
        %502 = vmatpush1.msra.mxu0 0.0
        %503 = vmatprep.subr.mxu0 0.0
        %504 = vmatpush1.msra.mxu0 0.0
        %505 = vmatprep.subr.mxu0 0.0
        %506 = vmatpush1.msra.mxu0 0.0
        %507 = vmatprep.subr.mxu0 0.0
        %508 = vmatpush1.msra.mxu0 0.0
        %509 = vmatprep.subr.mxu0 0.0
        %510 = vmatpush1.msra.mxu0 0.0
        %511 = vmatprep.subr.mxu0 0.0
        %512 = vmatpush1.msra.mxu0 0.0
        %513 = vmatprep.subr.mxu0 0.0
        %514 = vmatpush1.msra.mxu0 0.0
        %515 = vmatprep.subr.mxu0 0.0
        %516 = vmatpush1.msra.mxu0 0.0
        %517 = vmatprep.mubr.f32.mxu0 0.0
        %518 = vmatmul.mubr.f32.gmra.mrb[0].mxu0 %v334
        %v519 = vpop.f32.mrb[0].mxu0
        %v520 = vadd.f32 0.0, %v519
        %v521 = vpop.f32.mrb[0].mxu0
        %522 = vmatprep.mubr.f32.mxu0 0.0
        %523 = vmatmul.mubr.f32.gmra.mrb[0].mxu0 %v337
        %v524 = vpop.f32.mrb[0].mxu0
        %v525 = vadd.f32 0.0, %v524
        %v526 = vpop.f32.mrb[0].mxu0
        %527 = vmatprep.mubr.f32.mxu0 0.0
        %528 = vmatmul.mubr.f32.gmra.mrb[0].mxu0 %v340
        %v529 = vpop.f32.mrb[0].mxu0
        %v530 = vadd.f32 0.0, %v529
        %v531 = vpop.f32.mrb[0].mxu0
        %532 = vmatprep.mubr.f32.mxu0 0.0
        %533 = vmatmul.mubr.f32.gmra.mrb[0].mxu0 %v343
        %v534 = vpop.f32.mrb[0].mxu0
        %v535 = vadd.f32 0.0, %v534
        %v536 = vpop.f32.mrb[0].mxu0
        %537 = vmatprep.mubr.f32.mxu0 0.0
        %538 = vmatmul.mubr.f32.gmra.mrb[0].mxu0 %v346
        %v539 = vpop.f32.mrb[0].mxu0
        %v540 = vadd.f32 0.0, %v539
        %v541 = vpop.f32.mrb[0].mxu0
        %542 = vmatprep.mubr.f32.mxu0 0.0
        %543 = vmatmul.mubr.f32.gmra.mrb[0].mxu0 %v349
        %v544 = vpop.f32.mrb[0].mxu0
        %v545 = vadd.f32 0.0, %v544
        %v546 = vpop.f32.mrb[0].mxu0
        %547 = vmatprep.mubr.f32.mxu0 0.0
        %548 = vmatmul.mubr.f32.gmra.mrb[0].mxu0 %v352
        %v549 = vpop.f32.mrb[0].mxu0
        %v550 = vadd.f32 0.0, %v549
        %v551 = vpop.f32.mrb[0].mxu0
        %552 = vmatprep.mubr.f32.mxu0 0.0
        %553 = vmatmul.mubr.f32.gmra.mrb[0].mxu0 %v355
        %v554 = vpop.f32.mrb[0].mxu0
        %v555 = vadd.f32 0.0, %v554
        %v556 = vpop.f32.mrb[0].mxu0
        %557 = vmatprep.mubr.f32.mxu0 0.0
        %558 = vmatmul.mubr.f32.gmra.mrb[0].mxu0 %v358
        %v559 = vpop.f32.mrb[0].mxu0
        %v560 = vadd.f32 0.0, %v559
        %v561 = vpop.f32.mrb[0].mxu0
        %562 = vmatprep.mubr.f32.mxu0 0.0
        %563 = vmatmul.mubr.f32.gmra.mrb[0].mxu0 %v361
        %v564 = vpop.f32.mrb[0].mxu0
        %v565 = vadd.f32 0.0, %v564
        %v566 = vpop.f32.mrb[0].mxu0
        %567 = vmatprep.mubr.f32.mxu0 0.0
        %568 = vmatmul.mubr.f32.gmra.mrb[0].mxu0 %v364
        %v569 = vpop.f32.mrb[0].mxu0
        %v570 = vadd.f32 0.0, %v569
        %v571 = vpop.f32.mrb[0].mxu0
        %572 = vmatprep.mubr.f32.mxu0 0.0
        %573 = vmatmul.mubr.f32.gmra.mrb[0].mxu0 %v367
        %v574 = vpop.f32.mrb[0].mxu0
        %v575 = vadd.f32 0.0, %v574
        %v576 = vpop.f32.mrb[0].mxu0
        %577 = vmatprep.mubr.f32.mxu0 0.0
        %578 = vmatmul.mubr.f32.gmra.mrb[0].mxu0 %v370
        %v579 = vpop.f32.mrb[0].mxu0
        %v580 = vadd.f32 0.0, %v579
        %v581 = vpop.f32.mrb[0].mxu0
        %582 = vmatprep.mubr.f32.mxu0 0.0
        %583 = vmatmul.mubr.f32.gmra.mrb[0].mxu0 %v373
        %v584 = vpop.f32.mrb[0].mxu0
        %v585 = vadd.f32 0.0, %v584
        %v586 = vpop.f32.mrb[0].mxu0
        %587 = vmatprep.mubr.f32.mxu0 0.0
        %588 = vmatmul.mubr.f32.gmra.mrb[0].mxu0 %v376
        %v589 = vpop.f32.mrb[0].mxu0
        %v590 = vadd.f32 0.0, %v589
        %v591 = vpop.f32.mrb[0].mxu0
        %592 = vmatprep.mubr.f32.mxu0 0.0
        %593 = vmatmul.mubr.f32.gmra.mrb[0].mxu0 %v379
        %v594 = vpop.f32.mrb[0].mxu0
        %v595 = vadd.f32 0.0, %v594
        %v596 = vpop.f32.mrb[0].mxu0
        %597 = vmatprep.mubr.f32.mxu0 0.0
        %598 = vmatmul.mubr.f32.gmra.mrb[0].mxu0 %v382
        %v599 = vpop.f32.mrb[0].mxu0
        %v600 = vadd.f32 0.0, %v599
        %v601 = vpop.f32.mrb[0].mxu0
        %602 = vmatprep.mubr.f32.mxu0 0.0
        %603 = vmatmul.mubr.f32.gmra.mrb[0].mxu0 %v385
        %v604 = vpop.f32.mrb[0].mxu0
        %v605 = vadd.f32 0.0, %v604
        %v606 = vpop.f32.mrb[0].mxu0
        %607 = vmatprep.mubr.f32.mxu0 0.0
        %608 = vmatmul.mubr.f32.gmra.mrb[0].mxu0 %v388
        %v609 = vpop.f32.mrb[0].mxu0
        %v610 = vadd.f32 0.0, %v609
        %v611 = vpop.f32.mrb[0].mxu0
        %612 = vmatprep.mubr.f32.mxu0 0.0
        %613 = vmatmul.mubr.f32.gmra.mrb[0].mxu0 %v391
        %v614 = vpop.f32.mrb[0].mxu0
        %v615 = vadd.f32 0.0, %v614
        %v616 = vpop.f32.mrb[0].mxu0
        %617 = vmatprep.mubr.f32.mxu0 0.0
        %618 = vmatmul.mubr.f32.gmra.mrb[0].mxu0 %v394
        %v619 = vpop.f32.mrb[0].mxu0
        %v620 = vadd.f32 0.0, %v619
        %v621 = vpop.f32.mrb[0].mxu0
        %622 = vmatprep.mubr.f32.mxu0 0.0
        %623 = vmatmul.mubr.f32.gmra.mrb[0].mxu0 %v397
        %v624 = vpop.f32.mrb[0].mxu0
        %v625 = vadd.f32 0.0, %v624
        %v626 = vpop.f32.mrb[0].mxu0
        %627 = vmatprep.mubr.f32.mxu0 0.0
        %628 = vmatmul.mubr.f32.gmra.mrb[0].mxu0 %v400
        %v629 = vpop.f32.mrb[0].mxu0
        %v630 = vadd.f32 0.0, %v629
        %v631 = vpop.f32.mrb[0].mxu0
        %632 = vmatprep.mubr.f32.mxu0 0.0
        %633 = vmatmul.mubr.f32.gmra.mrb[0].mxu0 %v403
        %v634 = vpop.f32.mrb[0].mxu0
        %v635 = vadd.f32 0.0, %v634
        %v636 = vpop.f32.mrb[0].mxu0
        %637 = vmatprep.mubr.f32.mxu0 0.0
        %638 = vmatmul.mubr.f32.gmra.mrb[0].mxu0 %v406
        %v639 = vpop.f32.mrb[0].mxu0
        %v640 = vadd.f32 0.0, %v639
        %v641 = vpop.f32.mrb[0].mxu0
        %642 = vmatprep.mubr.f32.mxu0 0.0
        %643 = vmatmul.mubr.f32.gmra.mrb[0].mxu0 %v409
        %v644 = vpop.f32.mrb[0].mxu0
        %v645 = vadd.f32 0.0, %v644
        %v646 = vpop.f32.mrb[0].mxu0
        %647 = vmatprep.mubr.f32.mxu0 0.0
        %648 = vmatmul.mubr.f32.gmra.mrb[0].mxu0 %v412
        %v649 = vpop.f32.mrb[0].mxu0
        %v650 = vadd.f32 0.0, %v649
        %v651 = vpop.f32.mrb[0].mxu0
        %652 = vmatprep.mubr.f32.mxu0 0.0
        %653 = vmatmul.mubr.f32.gmra.mrb[0].mxu0 %v415
        %v654 = vpop.f32.mrb[0].mxu0
        %v655 = vadd.f32 0.0, %v654
        %v656 = vpop.f32.mrb[0].mxu0
        %657 = vmatprep.mubr.f32.mxu0 0.0
        %658 = vmatmul.mubr.f32.gmra.mrb[0].mxu0 %v418
        %v659 = vpop.f32.mrb[0].mxu0
        %v660 = vadd.f32 0.0, %v659
        %v661 = vpop.f32.mrb[0].mxu0
        %662 = vmatprep.mubr.f32.mxu0 0.0
        %663 = vmatmul.mubr.f32.gmra.mrb[0].mxu0 %v421
        %v664 = vpop.f32.mrb[0].mxu0
        %v665 = vadd.f32 0.0, %v664
        %v666 = vpop.f32.mrb[0].mxu0
        %667 = vmatprep.mubr.f32.mxu0 0.0
        %668 = vmatmul.mubr.f32.gmra.mrb[0].mxu0 %v424
        %v669 = vpop.f32.mrb[0].mxu0
        %v670 = vadd.f32 0.0, %v669
        %v671 = vpop.f32.mrb[0].mxu0
        %672 = vmatprep.mubr.f32.mxu0 0.0
        %673 = vmatmul.mubr.f32.gmra.mrb[0].mxu0 %v427
        %v674 = vpop.f32.mrb[0].mxu0
        %v675 = vadd.f32 0.0, %v674
        %v676 = vpop.f32.mrb[0].mxu0
        %677 = vmatprep.mubr.f32.mxu0 0.0
        %678 = vmatmul.mubr.f32.gmra.mrb[0].mxu0 %v430
        %v679 = vpop.f32.mrb[0].mxu0
        %v680 = vadd.f32 0.0, %v679
        %v681 = vpop.f32.mrb[0].mxu0
        %682 = vmatprep.mubr.f32.mxu0 0.0
        %683 = vmatmul.mubr.f32.gmra.mrb[0].mxu0 %v433
        %v684 = vpop.f32.mrb[0].mxu0
        %v685 = vadd.f32 0.0, %v684
        %v686 = vpop.f32.mrb[0].mxu0
        %687 = vmatprep.mubr.f32.mxu0 0.0
        %688 = vmatmul.mubr.f32.gmra.mrb[0].mxu0 %v436
        %v689 = vpop.f32.mrb[0].mxu0
        %v690 = vadd.f32 0.0, %v689
        %v691 = vpop.f32.mrb[0].mxu0
        %692 = vmatprep.mubr.f32.mxu0 0.0
        %693 = vmatmul.mubr.f32.gmra.mrb[0].mxu0 %v439
        %v694 = vpop.f32.mrb[0].mxu0
        %v695 = vadd.f32 0.0, %v694
        %v696 = vpop.f32.mrb[0].mxu0
        %697 = vmatprep.mubr.f32.mxu0 0.0
        %698 = vmatmul.mubr.f32.gmra.mrb[0].mxu0 %v442
        %v699 = vpop.f32.mrb[0].mxu0
        %v700 = vadd.f32 0.0, %v699
        %v701 = vpop.f32.mrb[0].mxu0
        %702 = vmatprep.mubr.f32.mxu0 0.0
        %703 = vmatmul.mubr.f32.gmra.mrb[0].mxu0 %v445
        %v704 = vpop.f32.mrb[0].mxu0
        %v705 = vadd.f32 0.0, %v704
        %v706 = vpop.f32.mrb[0].mxu0
        %707 = vmatprep.mubr.f32.mxu0 0.0
        %708 = vmatmul.mubr.f32.gmra.mrb[0].mxu0 %v448
        %v709 = vpop.f32.mrb[0].mxu0
        %v710 = vadd.f32 0.0, %v709
        %v711 = vpop.f32.mrb[0].mxu0
        %712 = vmatprep.mubr.f32.mxu0 0.0
        %713 = vmatmul.mubr.f32.gmra.mrb[0].mxu0 %v451
        %v714 = vpop.f32.mrb[0].mxu0
        %v715 = vadd.f32 0.0, %v714
        %v716 = vpop.f32.mrb[0].mxu0
        %717 = vdwg.mxu0
        %v719 = vsel %vm332, %v291, 0
        %721 = vmatprep.subr.mxu0 0.0
        %722 = vmatpush1.msra.mxu0 %v520
        %723 = vmatprep.subr.mxu0 0.0
        %724 = vmatpush1.msra.mxu0 %v525
        %725 = vmatprep.subr.mxu0 0.0
        %726 = vmatpush1.msra.mxu0 0.0
        %727 = vmatprep.subr.mxu0 0.0
        %728 = vmatpush1.msra.mxu0 0.0
        %729 = vmatprep.subr.mxu0 0.0
        %730 = vmatpush1.msra.mxu0 0.0
        %731 = vmatprep.subr.mxu0 0.0
        %732 = vmatpush1.msra.mxu0 0.0
        %733 = vmatprep.subr.mxu0 0.0
        %734 = vmatpush1.msra.mxu0 0.0
        %735 = vmatprep.subr.mxu0 0.0
        %736 = vmatpush1.msra.mxu0 0.0
        %737 = vmatprep.subr.mxu0 0.0
        %738 = vmatpush1.msra.mxu0 0.0
        %739 = vmatprep.subr.mxu0 0.0
        %740 = vmatpush1.msra.mxu0 0.0
        %741 = vmatprep.subr.mxu0 0.0
        %742 = vmatpush1.msra.mxu0 0.0
        %743 = vmatprep.subr.mxu0 0.0
        %744 = vmatpush1.msra.mxu0 0.0
        %745 = vmatprep.subr.mxu0 0.0
        %746 = vmatpush1.msra.mxu0 0.0
        %747 = vmatprep.subr.mxu0 0.0
        %748 = vmatpush1.msra.mxu0 0.0
        %749 = vmatprep.subr.mxu0 0.0
        %750 = vmatpush1.msra.mxu0 0.0
        %751 = vmatprep.subr.mxu0 0.0
        %752 = vmatpush1.msra.mxu0 0.0
        %753 = vmatprep.subr.mxu0 0.0
        %754 = vmatpush1.msra.mxu0 0.0
        %755 = vmatprep.subr.mxu0 0.0
        %756 = vmatpush1.msra.mxu0 0.0
        %757 = vmatprep.subr.mxu0 0.0
        %758 = vmatpush1.msra.mxu0 0.0
        %759 = vmatprep.subr.mxu0 0.0
        %760 = vmatpush1.msra.mxu0 0.0
        %761 = vmatprep.subr.mxu0 0.0
        %762 = vmatpush1.msra.mxu0 0.0
        %763 = vmatprep.subr.mxu0 0.0
        %764 = vmatpush1.msra.mxu0 0.0
        %765 = vmatprep.subr.mxu0 0.0
        %766 = vmatpush1.msra.mxu0 0.0
        %767 = vmatprep.subr.mxu0 0.0
        %768 = vmatpush1.msra.mxu0 0.0
        %769 = vmatprep.subr.mxu0 0.0
        %770 = vmatpush1.msra.mxu0 0.0
        %771 = vmatprep.subr.mxu0 0.0
        %772 = vmatpush1.msra.mxu0 0.0
        %773 = vmatprep.subr.mxu0 0.0
        %774 = vmatpush1.msra.mxu0 0.0
        %775 = vmatprep.subr.mxu0 0.0
        %776 = vmatpush1.msra.mxu0 0.0
        %777 = vmatprep.subr.mxu0 0.0
        %778 = vmatpush1.msra.mxu0 0.0
        %779 = vmatprep.subr.mxu0 0.0
        %780 = vmatpush1.msra.mxu0 0.0
        %781 = vmatprep.subr.mxu0 0.0
        %782 = vmatpush1.msra.mxu0 0.0
        %783 = vmatprep.subr.mxu0 0.0
        %784 = vmatpush1.msra.mxu0 0.0
        %785 = vmatprep.mubr.f32.mxu0 0.0
        %786 = vmatmul.mubr.f32.gmra.mrb[0].mxu0 %v719
        %v787 = vpop.f32.mrb[0].mxu0
        %v788 = vadd.f32 0.0, %v787
        %v789 = vpop.f32.mrb[0].mxu0
        %790 = vdwg.mxu0
        %791 = vmatprep.subr.mxu0 0.0
        %792 = vmatpush1.msra.mxu0 %v560
        %793 = vmatprep.subr.mxu0 0.0
        %794 = vmatpush1.msra.mxu0 %v565
        %795 = vmatprep.subr.mxu0 0.0
        %796 = vmatpush1.msra.mxu0 0.0
        %797 = vmatprep.subr.mxu0 0.0
        %798 = vmatpush1.msra.mxu0 0.0
        %799 = vmatprep.subr.mxu0 0.0
        %800 = vmatpush1.msra.mxu0 0.0
        %801 = vmatprep.subr.mxu0 0.0
        %802 = vmatpush1.msra.mxu0 0.0
        %803 = vmatprep.subr.mxu0 0.0
        %804 = vmatpush1.msra.mxu0 0.0
        %805 = vmatprep.subr.mxu0 0.0
        %806 = vmatpush1.msra.mxu0 0.0
        %807 = vmatprep.subr.mxu0 0.0
        %808 = vmatpush1.msra.mxu0 0.0
        %809 = vmatprep.subr.mxu0 0.0
        %810 = vmatpush1.msra.mxu0 0.0
        %811 = vmatprep.subr.mxu0 0.0
        %812 = vmatpush1.msra.mxu0 0.0
        %813 = vmatprep.subr.mxu0 0.0
        %814 = vmatpush1.msra.mxu0 0.0
        %815 = vmatprep.subr.mxu0 0.0
        %816 = vmatpush1.msra.mxu0 0.0
        %817 = vmatprep.subr.mxu0 0.0
        %818 = vmatpush1.msra.mxu0 0.0
        %819 = vmatprep.subr.mxu0 0.0
        %820 = vmatpush1.msra.mxu0 0.0
        %821 = vmatprep.subr.mxu0 0.0
        %822 = vmatpush1.msra.mxu0 0.0
        %823 = vmatprep.subr.mxu0 0.0
        %824 = vmatpush1.msra.mxu0 0.0
        %825 = vmatprep.subr.mxu0 0.0
        %826 = vmatpush1.msra.mxu0 0.0
        %827 = vmatprep.subr.mxu0 0.0
        %828 = vmatpush1.msra.mxu0 0.0
        %829 = vmatprep.subr.mxu0 0.0
        %830 = vmatpush1.msra.mxu0 0.0
        %831 = vmatprep.subr.mxu0 0.0
        %832 = vmatpush1.msra.mxu0 0.0
        %833 = vmatprep.subr.mxu0 0.0
        %834 = vmatpush1.msra.mxu0 0.0
        %835 = vmatprep.subr.mxu0 0.0
        %836 = vmatpush1.msra.mxu0 0.0
        %837 = vmatprep.subr.mxu0 0.0
        %838 = vmatpush1.msra.mxu0 0.0
        %839 = vmatprep.subr.mxu0 0.0
        %840 = vmatpush1.msra.mxu0 0.0
        %841 = vmatprep.subr.mxu0 0.0
        %842 = vmatpush1.msra.mxu0 0.0
        %843 = vmatprep.subr.mxu0 0.0
        %844 = vmatpush1.msra.mxu0 0.0
        %845 = vmatprep.subr.mxu0 0.0
        %846 = vmatpush1.msra.mxu0 0.0
        %847 = vmatprep.subr.mxu0 0.0
        %848 = vmatpush1.msra.mxu0 0.0
        %849 = vmatprep.subr.mxu0 0.0
        %850 = vmatpush1.msra.mxu0 0.0
        %851 = vmatprep.subr.mxu0 0.0
        %852 = vmatpush1.msra.mxu0 0.0
        %853 = vmatprep.subr.mxu0 0.0
        %854 = vmatpush1.msra.mxu0 0.0
        %855 = vmatprep.mubr.f32.mxu0 0.0
        %856 = vmatmul.mubr.f32.gmra.mrb[0].mxu0 %v719
        %v857 = vpop.f32.mrb[0].mxu0
        %v858 = vadd.f32 0.0, %v857
        %v859 = vpop.f32.mrb[0].mxu0
        %860 = vdwg.mxu0
        %861 = vmatprep.subr.mxu0 0.0
        %862 = vmatpush1.msra.mxu0 %v600
        %863 = vmatprep.subr.mxu0 0.0
        %864 = vmatpush1.msra.mxu0 %v605
        %865 = vmatprep.subr.mxu0 0.0
        %866 = vmatpush1.msra.mxu0 0.0
        %867 = vmatprep.subr.mxu0 0.0
        %868 = vmatpush1.msra.mxu0 0.0
        %869 = vmatprep.subr.mxu0 0.0
        %870 = vmatpush1.msra.mxu0 0.0
        %871 = vmatprep.subr.mxu0 0.0
        %872 = vmatpush1.msra.mxu0 0.0
        %873 = vmatprep.subr.mxu0 0.0
        %874 = vmatpush1.msra.mxu0 0.0
        %875 = vmatprep.subr.mxu0 0.0
        %876 = vmatpush1.msra.mxu0 0.0
        %877 = vmatprep.subr.mxu0 0.0
        %878 = vmatpush1.msra.mxu0 0.0
        %879 = vmatprep.subr.mxu0 0.0
        %880 = vmatpush1.msra.mxu0 0.0
        %881 = vmatprep.subr.mxu0 0.0
        %882 = vmatpush1.msra.mxu0 0.0
        %883 = vmatprep.subr.mxu0 0.0
        %884 = vmatpush1.msra.mxu0 0.0
        %885 = vmatprep.subr.mxu0 0.0
        %886 = vmatpush1.msra.mxu0 0.0
        %887 = vmatprep.subr.mxu0 0.0
        %888 = vmatpush1.msra.mxu0 0.0
        %889 = vmatprep.subr.mxu0 0.0
        %890 = vmatpush1.msra.mxu0 0.0
        %891 = vmatprep.subr.mxu0 0.0
        %892 = vmatpush1.msra.mxu0 0.0
        %893 = vmatprep.subr.mxu0 0.0
        %894 = vmatpush1.msra.mxu0 0.0
        %895 = vmatprep.subr.mxu0 0.0
        %896 = vmatpush1.msra.mxu0 0.0
        %897 = vmatprep.subr.mxu0 0.0
        %898 = vmatpush1.msra.mxu0 0.0
        %899 = vmatprep.subr.mxu0 0.0
        %900 = vmatpush1.msra.mxu0 0.0
        %901 = vmatprep.subr.mxu0 0.0
        %902 = vmatpush1.msra.mxu0 0.0
        %903 = vmatprep.subr.mxu0 0.0
        %904 = vmatpush1.msra.mxu0 0.0
        %905 = vmatprep.subr.mxu0 0.0
        %906 = vmatpush1.msra.mxu0 0.0
        %907 = vmatprep.subr.mxu0 0.0
        %908 = vmatpush1.msra.mxu0 0.0
        %909 = vmatprep.subr.mxu0 0.0
        %910 = vmatpush1.msra.mxu0 0.0
        %911 = vmatprep.subr.mxu0 0.0
        %912 = vmatpush1.msra.mxu0 0.0
        %913 = vmatprep.subr.mxu0 0.0
        %914 = vmatpush1.msra.mxu0 0.0
        %915 = vmatprep.subr.mxu0 0.0
        %916 = vmatpush1.msra.mxu0 0.0
        %917 = vmatprep.subr.mxu0 0.0
        %918 = vmatpush1.msra.mxu0 0.0
        %919 = vmatprep.subr.mxu0 0.0
        %920 = vmatpush1.msra.mxu0 0.0
        %921 = vmatprep.subr.mxu0 0.0
        %922 = vmatpush1.msra.mxu0 0.0
        %923 = vmatprep.subr.mxu0 0.0
        %924 = vmatpush1.msra.mxu0 0.0
        %925 = vmatprep.mubr.f32.mxu0 0.0
        %926 = vmatmul.mubr.f32.gmra.mrb[0].mxu0 %v719
        %v927 = vpop.f32.mrb[0].mxu0
        %v928 = vadd.f32 0.0, %v927
        %v929 = vpop.f32.mrb[0].mxu0
        %930 = vdwg.mxu0
        %931 = vmatprep.subr.mxu0 0.0
        %932 = vmatpush1.msra.mxu0 %v640
        %933 = vmatprep.subr.mxu0 0.0
        %934 = vmatpush1.msra.mxu0 %v645
        %935 = vmatprep.subr.mxu0 0.0
        %936 = vmatpush1.msra.mxu0 0.0
        %937 = vmatprep.subr.mxu0 0.0
        %938 = vmatpush1.msra.mxu0 0.0
        %939 = vmatprep.subr.mxu0 0.0
        %940 = vmatpush1.msra.mxu0 0.0
        %941 = vmatprep.subr.mxu0 0.0
        %942 = vmatpush1.msra.mxu0 0.0
        %943 = vmatprep.subr.mxu0 0.0
        %944 = vmatpush1.msra.mxu0 0.0
        %945 = vmatprep.subr.mxu0 0.0
        %946 = vmatpush1.msra.mxu0 0.0
        %947 = vmatprep.subr.mxu0 0.0
        %948 = vmatpush1.msra.mxu0 0.0
        %949 = vmatprep.subr.mxu0 0.0
        %950 = vmatpush1.msra.mxu0 0.0
        %951 = vmatprep.subr.mxu0 0.0
        %952 = vmatpush1.msra.mxu0 0.0
        %953 = vmatprep.subr.mxu0 0.0
        %954 = vmatpush1.msra.mxu0 0.0
        %955 = vmatprep.subr.mxu0 0.0
        %956 = vmatpush1.msra.mxu0 0.0
        %957 = vmatprep.subr.mxu0 0.0
        %958 = vmatpush1.msra.mxu0 0.0
        %959 = vmatprep.subr.mxu0 0.0
        %960 = vmatpush1.msra.mxu0 0.0
        %961 = vmatprep.subr.mxu0 0.0
        %962 = vmatpush1.msra.mxu0 0.0
        %963 = vmatprep.subr.mxu0 0.0
        %964 = vmatpush1.msra.mxu0 0.0
        %965 = vmatprep.subr.mxu0 0.0
        %966 = vmatpush1.msra.mxu0 0.0
        %967 = vmatprep.subr.mxu0 0.0
        %968 = vmatpush1.msra.mxu0 0.0
        %969 = vmatprep.subr.mxu0 0.0
        %970 = vmatpush1.msra.mxu0 0.0
        %971 = vmatprep.subr.mxu0 0.0
        %972 = vmatpush1.msra.mxu0 0.0
        %973 = vmatprep.subr.mxu0 0.0
        %974 = vmatpush1.msra.mxu0 0.0
        %975 = vmatprep.subr.mxu0 0.0
        %976 = vmatpush1.msra.mxu0 0.0
        %977 = vmatprep.subr.mxu0 0.0
        %978 = vmatpush1.msra.mxu0 0.0
        %979 = vmatprep.subr.mxu0 0.0
        %980 = vmatpush1.msra.mxu0 0.0
        %981 = vmatprep.subr.mxu0 0.0
        %982 = vmatpush1.msra.mxu0 0.0
        %983 = vmatprep.subr.mxu0 0.0
        %984 = vmatpush1.msra.mxu0 0.0
        %985 = vmatprep.subr.mxu0 0.0
        %986 = vmatpush1.msra.mxu0 0.0
        %987 = vmatprep.subr.mxu0 0.0
        %988 = vmatpush1.msra.mxu0 0.0
        %989 = vmatprep.subr.mxu0 0.0
        %990 = vmatpush1.msra.mxu0 0.0
        %991 = vmatprep.subr.mxu0 0.0
        %992 = vmatpush1.msra.mxu0 0.0
        %993 = vmatprep.subr.mxu0 0.0
        %994 = vmatpush1.msra.mxu0 0.0
        %995 = vmatprep.mubr.f32.mxu0 0.0
        %996 = vmatmul.mubr.f32.gmra.mrb[0].mxu0 %v719
        %v997 = vpop.f32.mrb[0].mxu0
        %v998 = vadd.f32 0.0, %v997
        %v999 = vpop.f32.mrb[0].mxu0
        %1000 = vdwg.mxu0
        %1001 = vmatprep.subr.mxu0 0.0
        %1002 = vmatpush1.msra.mxu0 %v680
        %1003 = vmatprep.subr.mxu0 0.0
        %1004 = vmatpush1.msra.mxu0 %v685
        %1005 = vmatprep.subr.mxu0 0.0
        %1006 = vmatpush1.msra.mxu0 0.0
        %1007 = vmatprep.subr.mxu0 0.0
        %1008 = vmatpush1.msra.mxu0 0.0
        %1009 = vmatprep.subr.mxu0 0.0
        %1010 = vmatpush1.msra.mxu0 0.0
        %1011 = vmatprep.subr.mxu0 0.0
        %1012 = vmatpush1.msra.mxu0 0.0
        %1013 = vmatprep.subr.mxu0 0.0
        %1014 = vmatpush1.msra.mxu0 0.0
        %1015 = vmatprep.subr.mxu0 0.0
        %1016 = vmatpush1.msra.mxu0 0.0
        %1017 = vmatprep.subr.mxu0 0.0
        %1018 = vmatpush1.msra.mxu0 0.0
        %1019 = vmatprep.subr.mxu0 0.0
        %1020 = vmatpush1.msra.mxu0 0.0
        %1021 = vmatprep.subr.mxu0 0.0
        %1022 = vmatpush1.msra.mxu0 0.0
        %1023 = vmatprep.subr.mxu0 0.0
        %1024 = vmatpush1.msra.mxu0 0.0
        %1025 = vmatprep.subr.mxu0 0.0
        %1026 = vmatpush1.msra.mxu0 0.0
        %1027 = vmatprep.subr.mxu0 0.0
        %1028 = vmatpush1.msra.mxu0 0.0
        %1029 = vmatprep.subr.mxu0 0.0
        %1030 = vmatpush1.msra.mxu0 0.0
        %1031 = vmatprep.subr.mxu0 0.0
        %1032 = vmatpush1.msra.mxu0 0.0
        %1033 = vmatprep.subr.mxu0 0.0
        %1034 = vmatpush1.msra.mxu0 0.0
        %1035 = vmatprep.subr.mxu0 0.0
        %1036 = vmatpush1.msra.mxu0 0.0
        %1037 = vmatprep.subr.mxu0 0.0
        %1038 = vmatpush1.msra.mxu0 0.0
        %1039 = vmatprep.subr.mxu0 0.0
        %1040 = vmatpush1.msra.mxu0 0.0
        %1041 = vmatprep.subr.mxu0 0.0
        %1042 = vmatpush1.msra.mxu0 0.0
        %1043 = vmatprep.subr.mxu0 0.0
        %1044 = vmatpush1.msra.mxu0 0.0
        %1045 = vmatprep.subr.mxu0 0.0
        %1046 = vmatpush1.msra.mxu0 0.0
        %1047 = vmatprep.subr.mxu0 0.0
        %1048 = vmatpush1.msra.mxu0 0.0
        %1049 = vmatprep.subr.mxu0 0.0
        %1050 = vmatpush1.msra.mxu0 0.0
        %1051 = vmatprep.subr.mxu0 0.0
        %1052 = vmatpush1.msra.mxu0 0.0
        %1053 = vmatprep.subr.mxu0 0.0
        %1054 = vmatpush1.msra.mxu0 0.0
        %1055 = vmatprep.subr.mxu0 0.0
        %1056 = vmatpush1.msra.mxu0 0.0
        %1057 = vmatprep.subr.mxu0 0.0
        %1058 = vmatpush1.msra.mxu0 0.0
        %1059 = vmatprep.subr.mxu0 0.0
        %1060 = vmatpush1.msra.mxu0 0.0
        %1061 = vmatprep.subr.mxu0 0.0
        %1062 = vmatpush1.msra.mxu0 0.0
        %1063 = vmatprep.subr.mxu0 0.0
        %1064 = vmatpush1.msra.mxu0 0.0
        %1065 = vmatprep.mubr.f32.mxu0 0.0
        %1066 = vmatmul.mubr.f32.gmra.mrb[0].mxu0 %v719
        %v1067 = vpop.f32.mrb[0].mxu0
        %v1068 = vadd.f32 0.0, %v1067
        %v1069 = vpop.f32.mrb[0].mxu0
        %1070 = vdwg.mxu0
        %v1071 = vmul.f32 %v788, %v788
        %v1072 = vmul.f32 %v858, %v858
        %v1073 = vmul.f32 %v788, %v858
        %v1074 = vsub.f32 %v928, %v1071
        %v1075 = vsub.f32 %v998, %v1072
        %v1076 = vsub.f32 %v1068, %v1073
        %v1077 = vmul.f32 %v1076, 2.0
        %v1078 = vstv %s288
        %v1079 = vadd.f32 %v1077, %v1078
        %v1080 = vadd.f32 %v1074, %v1075
        %v1081 = vadd.f32 %v1080, %v1078
        %v1082 = vmul.f32 %v1073, 2.0
        %v1083 = vstv %s286
        %v1084 = vadd.f32 %v1082, %v1083
        %v1085 = vmul.f32 %v1084, %v1079
        %v1086 = vadd.f32 %v1071, %v1072
        %v1087 = vadd.f32 %v1086, %v1083
        %v1088 = vmul.f32 %v1087, %v1081
        %v1089 = vrcp.pop %v1088
        %v1090 = vmul.f32 %v1088, %v1089
        %v1091 = vsub.f32 2.0, %v1090
        %v1092 = vmul.f32 %v1089, %v1091
        %v1093 = vmul.f32 %v1085, %v1092
        %vm1094 = vcmask 46080
        %v1095 = vsel %vm1094, %v1093, 0.0
        %v1096 = vrot.slane %v1095, 4
        %v1097 = vadd.f32 %v1095, %v1096
        %v1098 = vrot.slane %v1097, 2
        %v1099 = vadd.f32 %v1097, %v1098
        %v1100 = vrot.slane %v1099, 1
        %v1101 = vadd.f32 %v1099, %v1100
        %1102 = vmatprep.subr.mxu0 0.0
        %1103 = vmatpush1.msra.mxu0 %v530
        %1104 = vmatprep.subr.mxu0 0.0
        %1105 = vmatpush1.msra.mxu0 %v535
        %1106 = vmatprep.subr.mxu0 0.0
        %1107 = vmatpush1.msra.mxu0 0.0
        %1108 = vmatprep.subr.mxu0 0.0
        %1109 = vmatpush1.msra.mxu0 0.0
        %1110 = vmatprep.subr.mxu0 0.0
        %1111 = vmatpush1.msra.mxu0 0.0
        %1112 = vmatprep.subr.mxu0 0.0
        %1113 = vmatpush1.msra.mxu0 0.0
        %1114 = vmatprep.subr.mxu0 0.0
        %1115 = vmatpush1.msra.mxu0 0.0
        %1116 = vmatprep.subr.mxu0 0.0
        %1117 = vmatpush1.msra.mxu0 0.0
        %1118 = vmatprep.subr.mxu0 0.0
        %1119 = vmatpush1.msra.mxu0 0.0
        %1120 = vmatprep.subr.mxu0 0.0
        %1121 = vmatpush1.msra.mxu0 0.0
        %1122 = vmatprep.subr.mxu0 0.0
        %1123 = vmatpush1.msra.mxu0 0.0
        %1124 = vmatprep.subr.mxu0 0.0
        %1125 = vmatpush1.msra.mxu0 0.0
        %1126 = vmatprep.subr.mxu0 0.0
        %1127 = vmatpush1.msra.mxu0 0.0
        %1128 = vmatprep.subr.mxu0 0.0
        %1129 = vmatpush1.msra.mxu0 0.0
        %1130 = vmatprep.subr.mxu0 0.0
        %1131 = vmatpush1.msra.mxu0 0.0
        %1132 = vmatprep.subr.mxu0 0.0
        %1133 = vmatpush1.msra.mxu0 0.0
        %1134 = vmatprep.subr.mxu0 0.0
        %1135 = vmatpush1.msra.mxu0 0.0
        %1136 = vmatprep.subr.mxu0 0.0
        %1137 = vmatpush1.msra.mxu0 0.0
        %1138 = vmatprep.subr.mxu0 0.0
        %1139 = vmatpush1.msra.mxu0 0.0
        %1140 = vmatprep.subr.mxu0 0.0
        %1141 = vmatpush1.msra.mxu0 0.0
        %1142 = vmatprep.subr.mxu0 0.0
        %1143 = vmatpush1.msra.mxu0 0.0
        %1144 = vmatprep.subr.mxu0 0.0
        %1145 = vmatpush1.msra.mxu0 0.0
        %1146 = vmatprep.subr.mxu0 0.0
        %1147 = vmatpush1.msra.mxu0 0.0
        %1148 = vmatprep.subr.mxu0 0.0
        %1149 = vmatpush1.msra.mxu0 0.0
        %1150 = vmatprep.subr.mxu0 0.0
        %1151 = vmatpush1.msra.mxu0 0.0
        %1152 = vmatprep.subr.mxu0 0.0
        %1153 = vmatpush1.msra.mxu0 0.0
        %1154 = vmatprep.subr.mxu0 0.0
        %1155 = vmatpush1.msra.mxu0 0.0
        %1156 = vmatprep.subr.mxu0 0.0
        %1157 = vmatpush1.msra.mxu0 0.0
        %1158 = vmatprep.subr.mxu0 0.0
        %1159 = vmatpush1.msra.mxu0 0.0
        %1160 = vmatprep.subr.mxu0 0.0
        %1161 = vmatpush1.msra.mxu0 0.0
        %1162 = vmatprep.subr.mxu0 0.0
        %1163 = vmatpush1.msra.mxu0 0.0
        %1164 = vmatprep.subr.mxu0 0.0
        %1165 = vmatpush1.msra.mxu0 0.0
        %1166 = vmatprep.mubr.f32.mxu0 0.0
        %1167 = vmatmul.mubr.f32.gmra.mrb[0].mxu0 %v719
        %v1168 = vpop.f32.mrb[0].mxu0
        %v1169 = vadd.f32 0.0, %v1168
        %v1170 = vpop.f32.mrb[0].mxu0
        %1171 = vdwg.mxu0
        %1172 = vmatprep.subr.mxu0 0.0
        %1173 = vmatpush1.msra.mxu0 %v570
        %1174 = vmatprep.subr.mxu0 0.0
        %1175 = vmatpush1.msra.mxu0 %v575
        %1176 = vmatprep.subr.mxu0 0.0
        %1177 = vmatpush1.msra.mxu0 0.0
        %1178 = vmatprep.subr.mxu0 0.0
        %1179 = vmatpush1.msra.mxu0 0.0
        %1180 = vmatprep.subr.mxu0 0.0
        %1181 = vmatpush1.msra.mxu0 0.0
        %1182 = vmatprep.subr.mxu0 0.0
        %1183 = vmatpush1.msra.mxu0 0.0
        %1184 = vmatprep.subr.mxu0 0.0
        %1185 = vmatpush1.msra.mxu0 0.0
        %1186 = vmatprep.subr.mxu0 0.0
        %1187 = vmatpush1.msra.mxu0 0.0
        %1188 = vmatprep.subr.mxu0 0.0
        %1189 = vmatpush1.msra.mxu0 0.0
        %1190 = vmatprep.subr.mxu0 0.0
        %1191 = vmatpush1.msra.mxu0 0.0
        %1192 = vmatprep.subr.mxu0 0.0
        %1193 = vmatpush1.msra.mxu0 0.0
        %1194 = vmatprep.subr.mxu0 0.0
        %1195 = vmatpush1.msra.mxu0 0.0
        %1196 = vmatprep.subr.mxu0 0.0
        %1197 = vmatpush1.msra.mxu0 0.0
        %1198 = vmatprep.subr.mxu0 0.0
        %1199 = vmatpush1.msra.mxu0 0.0
        %1200 = vmatprep.subr.mxu0 0.0
        %1201 = vmatpush1.msra.mxu0 0.0
        %1202 = vmatprep.subr.mxu0 0.0
        %1203 = vmatpush1.msra.mxu0 0.0
        %1204 = vmatprep.subr.mxu0 0.0
        %1205 = vmatpush1.msra.mxu0 0.0
        %1206 = vmatprep.subr.mxu0 0.0
        %1207 = vmatpush1.msra.mxu0 0.0
        %1208 = vmatprep.subr.mxu0 0.0
        %1209 = vmatpush1.msra.mxu0 0.0
        %1210 = vmatprep.subr.mxu0 0.0
        %1211 = vmatpush1.msra.mxu0 0.0
        %1212 = vmatprep.subr.mxu0 0.0
        %1213 = vmatpush1.msra.mxu0 0.0
        %1214 = vmatprep.subr.mxu0 0.0
        %1215 = vmatpush1.msra.mxu0 0.0
        %1216 = vmatprep.subr.mxu0 0.0
        %1217 = vmatpush1.msra.mxu0 0.0
        %1218 = vmatprep.subr.mxu0 0.0
        %1219 = vmatpush1.msra.mxu0 0.0
        %1220 = vmatprep.subr.mxu0 0.0
        %1221 = vmatpush1.msra.mxu0 0.0
        %1222 = vmatprep.subr.mxu0 0.0
        %1223 = vmatpush1.msra.mxu0 0.0
        %1224 = vmatprep.subr.mxu0 0.0
        %1225 = vmatpush1.msra.mxu0 0.0
        %1226 = vmatprep.subr.mxu0 0.0
        %1227 = vmatpush1.msra.mxu0 0.0
        %1228 = vmatprep.subr.mxu0 0.0
        %1229 = vmatpush1.msra.mxu0 0.0
        %1230 = vmatprep.subr.mxu0 0.0
        %1231 = vmatpush1.msra.mxu0 0.0
        %1232 = vmatprep.subr.mxu0 0.0
        %1233 = vmatpush1.msra.mxu0 0.0
        %1234 = vmatprep.subr.mxu0 0.0
        %1235 = vmatpush1.msra.mxu0 0.0
        %1236 = vmatprep.mubr.f32.mxu0 0.0
        %1237 = vmatmul.mubr.f32.gmra.mrb[0].mxu0 %v719
        %v1238 = vpop.f32.mrb[0].mxu0
        %v1239 = vadd.f32 0.0, %v1238
        %v1240 = vpop.f32.mrb[0].mxu0
        %1241 = vdwg.mxu0
        %1242 = vmatprep.subr.mxu0 0.0
        %1243 = vmatpush1.msra.mxu0 %v610
        %1244 = vmatprep.subr.mxu0 0.0
        %1245 = vmatpush1.msra.mxu0 %v615
        %1246 = vmatprep.subr.mxu0 0.0
        %1247 = vmatpush1.msra.mxu0 0.0
        %1248 = vmatprep.subr.mxu0 0.0
        %1249 = vmatpush1.msra.mxu0 0.0
        %1250 = vmatprep.subr.mxu0 0.0
        %1251 = vmatpush1.msra.mxu0 0.0
        %1252 = vmatprep.subr.mxu0 0.0
        %1253 = vmatpush1.msra.mxu0 0.0
        %1254 = vmatprep.subr.mxu0 0.0
        %1255 = vmatpush1.msra.mxu0 0.0
        %1256 = vmatprep.subr.mxu0 0.0
        %1257 = vmatpush1.msra.mxu0 0.0
        %1258 = vmatprep.subr.mxu0 0.0
        %1259 = vmatpush1.msra.mxu0 0.0
        %1260 = vmatprep.subr.mxu0 0.0
        %1261 = vmatpush1.msra.mxu0 0.0
        %1262 = vmatprep.subr.mxu0 0.0
        %1263 = vmatpush1.msra.mxu0 0.0
        %1264 = vmatprep.subr.mxu0 0.0
        %1265 = vmatpush1.msra.mxu0 0.0
        %1266 = vmatprep.subr.mxu0 0.0
        %1267 = vmatpush1.msra.mxu0 0.0
        %1268 = vmatprep.subr.mxu0 0.0
        %1269 = vmatpush1.msra.mxu0 0.0
        %1270 = vmatprep.subr.mxu0 0.0
        %1271 = vmatpush1.msra.mxu0 0.0
        %1272 = vmatprep.subr.mxu0 0.0
        %1273 = vmatpush1.msra.mxu0 0.0
        %1274 = vmatprep.subr.mxu0 0.0
        %1275 = vmatpush1.msra.mxu0 0.0
        %1276 = vmatprep.subr.mxu0 0.0
        %1277 = vmatpush1.msra.mxu0 0.0
        %1278 = vmatprep.subr.mxu0 0.0
        %1279 = vmatpush1.msra.mxu0 0.0
        %1280 = vmatprep.subr.mxu0 0.0
        %1281 = vmatpush1.msra.mxu0 0.0
        %1282 = vmatprep.subr.mxu0 0.0
        %1283 = vmatpush1.msra.mxu0 0.0
        %1284 = vmatprep.subr.mxu0 0.0
        %1285 = vmatpush1.msra.mxu0 0.0
        %1286 = vmatprep.subr.mxu0 0.0
        %1287 = vmatpush1.msra.mxu0 0.0
        %1288 = vmatprep.subr.mxu0 0.0
        %1289 = vmatpush1.msra.mxu0 0.0
        %1290 = vmatprep.subr.mxu0 0.0
        %1291 = vmatpush1.msra.mxu0 0.0
        %1292 = vmatprep.subr.mxu0 0.0
        %1293 = vmatpush1.msra.mxu0 0.0
        %1294 = vmatprep.subr.mxu0 0.0
        %1295 = vmatpush1.msra.mxu0 0.0
        %1296 = vmatprep.subr.mxu0 0.0
        %1297 = vmatpush1.msra.mxu0 0.0
        %1298 = vmatprep.subr.mxu0 0.0
        %1299 = vmatpush1.msra.mxu0 0.0
        %1300 = vmatprep.subr.mxu0 0.0
        %1301 = vmatpush1.msra.mxu0 0.0
        %1302 = vmatprep.subr.mxu0 0.0
        %1303 = vmatpush1.msra.mxu0 0.0
        %1304 = vmatprep.subr.mxu0 0.0
        %1305 = vmatpush1.msra.mxu0 0.0
        %1306 = vmatprep.mubr.f32.mxu0 0.0
        %1307 = vmatmul.mubr.f32.gmra.mrb[0].mxu0 %v719
        %v1308 = vpop.f32.mrb[0].mxu0
        %v1309 = vadd.f32 0.0, %v1308
        %v1310 = vpop.f32.mrb[0].mxu0
        %1311 = vdwg.mxu0
        %1312 = vmatprep.subr.mxu0 0.0
        %1313 = vmatpush1.msra.mxu0 %v650
        %1314 = vmatprep.subr.mxu0 0.0
        %1315 = vmatpush1.msra.mxu0 %v655
        %1316 = vmatprep.subr.mxu0 0.0
        %1317 = vmatpush1.msra.mxu0 0.0
        %1318 = vmatprep.subr.mxu0 0.0
        %1319 = vmatpush1.msra.mxu0 0.0
        %1320 = vmatprep.subr.mxu0 0.0
        %1321 = vmatpush1.msra.mxu0 0.0
        %1322 = vmatprep.subr.mxu0 0.0
        %1323 = vmatpush1.msra.mxu0 0.0
        %1324 = vmatprep.subr.mxu0 0.0
        %1325 = vmatpush1.msra.mxu0 0.0
        %1326 = vmatprep.subr.mxu0 0.0
        %1327 = vmatpush1.msra.mxu0 0.0
        %1328 = vmatprep.subr.mxu0 0.0
        %1329 = vmatpush1.msra.mxu0 0.0
        %1330 = vmatprep.subr.mxu0 0.0
        %1331 = vmatpush1.msra.mxu0 0.0
        %1332 = vmatprep.subr.mxu0 0.0
        %1333 = vmatpush1.msra.mxu0 0.0
        %1334 = vmatprep.subr.mxu0 0.0
        %1335 = vmatpush1.msra.mxu0 0.0
        %1336 = vmatprep.subr.mxu0 0.0
        %1337 = vmatpush1.msra.mxu0 0.0
        %1338 = vmatprep.subr.mxu0 0.0
        %1339 = vmatpush1.msra.mxu0 0.0
        %1340 = vmatprep.subr.mxu0 0.0
        %1341 = vmatpush1.msra.mxu0 0.0
        %1342 = vmatprep.subr.mxu0 0.0
        %1343 = vmatpush1.msra.mxu0 0.0
        %1344 = vmatprep.subr.mxu0 0.0
        %1345 = vmatpush1.msra.mxu0 0.0
        %1346 = vmatprep.subr.mxu0 0.0
        %1347 = vmatpush1.msra.mxu0 0.0
        %1348 = vmatprep.subr.mxu0 0.0
        %1349 = vmatpush1.msra.mxu0 0.0
        %1350 = vmatprep.subr.mxu0 0.0
        %1351 = vmatpush1.msra.mxu0 0.0
        %1352 = vmatprep.subr.mxu0 0.0
        %1353 = vmatpush1.msra.mxu0 0.0
        %1354 = vmatprep.subr.mxu0 0.0
        %1355 = vmatpush1.msra.mxu0 0.0
        %1356 = vmatprep.subr.mxu0 0.0
        %1357 = vmatpush1.msra.mxu0 0.0
        %1358 = vmatprep.subr.mxu0 0.0
        %1359 = vmatpush1.msra.mxu0 0.0
        %1360 = vmatprep.subr.mxu0 0.0
        %1361 = vmatpush1.msra.mxu0 0.0
        %1362 = vmatprep.subr.mxu0 0.0
        %1363 = vmatpush1.msra.mxu0 0.0
        %1364 = vmatprep.subr.mxu0 0.0
        %1365 = vmatpush1.msra.mxu0 0.0
        %1366 = vmatprep.subr.mxu0 0.0
        %1367 = vmatpush1.msra.mxu0 0.0
        %1368 = vmatprep.subr.mxu0 0.0
        %1369 = vmatpush1.msra.mxu0 0.0
        %1370 = vmatprep.subr.mxu0 0.0
        %1371 = vmatpush1.msra.mxu0 0.0
        %1372 = vmatprep.subr.mxu0 0.0
        %1373 = vmatpush1.msra.mxu0 0.0
        %1374 = vmatprep.subr.mxu0 0.0
        %1375 = vmatpush1.msra.mxu0 0.0
        %1376 = vmatprep.mubr.f32.mxu0 0.0
        %1377 = vmatmul.mubr.f32.gmra.mrb[0].mxu0 %v719
        %v1378 = vpop.f32.mrb[0].mxu0
        %v1379 = vadd.f32 0.0, %v1378
        %v1380 = vpop.f32.mrb[0].mxu0
        %1381 = vdwg.mxu0
        %1382 = vmatprep.subr.mxu0 0.0
        %1383 = vmatpush1.msra.mxu0 %v690
        %1384 = vmatprep.subr.mxu0 0.0
        %1385 = vmatpush1.msra.mxu0 %v695
        %1386 = vmatprep.subr.mxu0 0.0
        %1387 = vmatpush1.msra.mxu0 0.0
        %1388 = vmatprep.subr.mxu0 0.0
        %1389 = vmatpush1.msra.mxu0 0.0
        %1390 = vmatprep.subr.mxu0 0.0
        %1391 = vmatpush1.msra.mxu0 0.0
        %1392 = vmatprep.subr.mxu0 0.0
        %1393 = vmatpush1.msra.mxu0 0.0
        %1394 = vmatprep.subr.mxu0 0.0
        %1395 = vmatpush1.msra.mxu0 0.0
        %1396 = vmatprep.subr.mxu0 0.0
        %1397 = vmatpush1.msra.mxu0 0.0
        %1398 = vmatprep.subr.mxu0 0.0
        %1399 = vmatpush1.msra.mxu0 0.0
        %1400 = vmatprep.subr.mxu0 0.0
        %1401 = vmatpush1.msra.mxu0 0.0
        %1402 = vmatprep.subr.mxu0 0.0
        %1403 = vmatpush1.msra.mxu0 0.0
        %1404 = vmatprep.subr.mxu0 0.0
        %1405 = vmatpush1.msra.mxu0 0.0
        %1406 = vmatprep.subr.mxu0 0.0
        %1407 = vmatpush1.msra.mxu0 0.0
        %1408 = vmatprep.subr.mxu0 0.0
        %1409 = vmatpush1.msra.mxu0 0.0
        %1410 = vmatprep.subr.mxu0 0.0
        %1411 = vmatpush1.msra.mxu0 0.0
        %1412 = vmatprep.subr.mxu0 0.0
        %1413 = vmatpush1.msra.mxu0 0.0
        %1414 = vmatprep.subr.mxu0 0.0
        %1415 = vmatpush1.msra.mxu0 0.0
        %1416 = vmatprep.subr.mxu0 0.0
        %1417 = vmatpush1.msra.mxu0 0.0
        %1418 = vmatprep.subr.mxu0 0.0
        %1419 = vmatpush1.msra.mxu0 0.0
        %1420 = vmatprep.subr.mxu0 0.0
        %1421 = vmatpush1.msra.mxu0 0.0
        %1422 = vmatprep.subr.mxu0 0.0
        %1423 = vmatpush1.msra.mxu0 0.0
        %1424 = vmatprep.subr.mxu0 0.0
        %1425 = vmatpush1.msra.mxu0 0.0
        %1426 = vmatprep.subr.mxu0 0.0
        %1427 = vmatpush1.msra.mxu0 0.0
        %1428 = vmatprep.subr.mxu0 0.0
        %1429 = vmatpush1.msra.mxu0 0.0
        %1430 = vmatprep.subr.mxu0 0.0
        %1431 = vmatpush1.msra.mxu0 0.0
        %1432 = vmatprep.subr.mxu0 0.0
        %1433 = vmatpush1.msra.mxu0 0.0
        %1434 = vmatprep.subr.mxu0 0.0
        %1435 = vmatpush1.msra.mxu0 0.0
        %1436 = vmatprep.subr.mxu0 0.0
        %1437 = vmatpush1.msra.mxu0 0.0
        %1438 = vmatprep.subr.mxu0 0.0
        %1439 = vmatpush1.msra.mxu0 0.0
        %1440 = vmatprep.subr.mxu0 0.0
        %1441 = vmatpush1.msra.mxu0 0.0
        %1442 = vmatprep.subr.mxu0 0.0
        %1443 = vmatpush1.msra.mxu0 0.0
        %1444 = vmatprep.subr.mxu0 0.0
        %1445 = vmatpush1.msra.mxu0 0.0
        %1446 = vmatprep.mubr.f32.mxu0 0.0
        %1447 = vmatmul.mubr.f32.gmra.mrb[0].mxu0 %v719
        %v1448 = vpop.f32.mrb[0].mxu0
        %v1449 = vadd.f32 0.0, %v1448
        %v1450 = vpop.f32.mrb[0].mxu0
        %1451 = vdwg.mxu0
        %v1452 = vmul.f32 %v1169, %v1169
        %v1453 = vmul.f32 %v1239, %v1239
        %v1454 = vmul.f32 %v1169, %v1239
        %v1455 = vsub.f32 %v1309, %v1452
        %v1456 = vsub.f32 %v1379, %v1453
        %v1457 = vsub.f32 %v1449, %v1454
        %v1458 = vmul.f32 %v1457, 2.0
        %v1459 = vadd.f32 %v1458, %v1078
        %v1460 = vadd.f32 %v1455, %v1456
        %v1461 = vadd.f32 %v1460, %v1078
        %v1462 = vmul.f32 %v1454, 2.0
        %v1463 = vadd.f32 %v1462, %v1083
        %v1464 = vmul.f32 %v1463, %v1459
        %v1465 = vadd.f32 %v1452, %v1453
        %v1466 = vadd.f32 %v1465, %v1083
        %v1467 = vmul.f32 %v1466, %v1461
        %v1468 = vrcp.pop %v1467
        %v1469 = vmul.f32 %v1467, %v1468
        %v1470 = vsub.f32 2.0, %v1469
        %v1471 = vmul.f32 %v1468, %v1470
        %v1472 = vmul.f32 %v1464, %v1471
        %v1473 = vsel %vm1094, %v1472, 0.0
        %v1474 = vrot.slane %v1473, 4
        %v1475 = vadd.f32 %v1473, %v1474
        %v1476 = vrot.slane %v1475, 2
        %v1477 = vadd.f32 %v1475, %v1476
        %v1478 = vrot.slane %v1477, 1
        %v1479 = vadd.f32 %v1477, %v1478
        %v1480 = vadd.f32 %v1101, %v1479
        %1481 = vmatprep.subr.mxu0 0.0
        %1482 = vmatpush1.msra.mxu0 %v540
        %1483 = vmatprep.subr.mxu0 0.0
        %1484 = vmatpush1.msra.mxu0 %v545
        %1485 = vmatprep.subr.mxu0 0.0
        %1486 = vmatpush1.msra.mxu0 0.0
        %1487 = vmatprep.subr.mxu0 0.0
        %1488 = vmatpush1.msra.mxu0 0.0
        %1489 = vmatprep.subr.mxu0 0.0
        %1490 = vmatpush1.msra.mxu0 0.0
        %1491 = vmatprep.subr.mxu0 0.0
        %1492 = vmatpush1.msra.mxu0 0.0
        %1493 = vmatprep.subr.mxu0 0.0
        %1494 = vmatpush1.msra.mxu0 0.0
        %1495 = vmatprep.subr.mxu0 0.0
        %1496 = vmatpush1.msra.mxu0 0.0
        %1497 = vmatprep.subr.mxu0 0.0
        %1498 = vmatpush1.msra.mxu0 0.0
        %1499 = vmatprep.subr.mxu0 0.0
        %1500 = vmatpush1.msra.mxu0 0.0
        %1501 = vmatprep.subr.mxu0 0.0
        %1502 = vmatpush1.msra.mxu0 0.0
        %1503 = vmatprep.subr.mxu0 0.0
        %1504 = vmatpush1.msra.mxu0 0.0
        %1505 = vmatprep.subr.mxu0 0.0
        %1506 = vmatpush1.msra.mxu0 0.0
        %1507 = vmatprep.subr.mxu0 0.0
        %1508 = vmatpush1.msra.mxu0 0.0
        %1509 = vmatprep.subr.mxu0 0.0
        %1510 = vmatpush1.msra.mxu0 0.0
        %1511 = vmatprep.subr.mxu0 0.0
        %1512 = vmatpush1.msra.mxu0 0.0
        %1513 = vmatprep.subr.mxu0 0.0
        %1514 = vmatpush1.msra.mxu0 0.0
        %1515 = vmatprep.subr.mxu0 0.0
        %1516 = vmatpush1.msra.mxu0 0.0
        %1517 = vmatprep.subr.mxu0 0.0
        %1518 = vmatpush1.msra.mxu0 0.0
        %1519 = vmatprep.subr.mxu0 0.0
        %1520 = vmatpush1.msra.mxu0 0.0
        %1521 = vmatprep.subr.mxu0 0.0
        %1522 = vmatpush1.msra.mxu0 0.0
        %1523 = vmatprep.subr.mxu0 0.0
        %1524 = vmatpush1.msra.mxu0 0.0
        %1525 = vmatprep.subr.mxu0 0.0
        %1526 = vmatpush1.msra.mxu0 0.0
        %1527 = vmatprep.subr.mxu0 0.0
        %1528 = vmatpush1.msra.mxu0 0.0
        %1529 = vmatprep.subr.mxu0 0.0
        %1530 = vmatpush1.msra.mxu0 0.0
        %1531 = vmatprep.subr.mxu0 0.0
        %1532 = vmatpush1.msra.mxu0 0.0
        %1533 = vmatprep.subr.mxu0 0.0
        %1534 = vmatpush1.msra.mxu0 0.0
        %1535 = vmatprep.subr.mxu0 0.0
        %1536 = vmatpush1.msra.mxu0 0.0
        %1537 = vmatprep.subr.mxu0 0.0
        %1538 = vmatpush1.msra.mxu0 0.0
        %1539 = vmatprep.subr.mxu0 0.0
        %1540 = vmatpush1.msra.mxu0 0.0
        %1541 = vmatprep.subr.mxu0 0.0
        %1542 = vmatpush1.msra.mxu0 0.0
        %1543 = vmatprep.subr.mxu0 0.0
        %1544 = vmatpush1.msra.mxu0 0.0
        %1545 = vmatprep.mubr.f32.mxu0 0.0
        %1546 = vmatmul.mubr.f32.gmra.mrb[0].mxu0 %v719
        %v1547 = vpop.f32.mrb[0].mxu0
        %v1548 = vadd.f32 0.0, %v1547
        %v1549 = vpop.f32.mrb[0].mxu0
        %1550 = vdwg.mxu0
        %1551 = vmatprep.subr.mxu0 0.0
        %1552 = vmatpush1.msra.mxu0 %v580
        %1553 = vmatprep.subr.mxu0 0.0
        %1554 = vmatpush1.msra.mxu0 %v585
        %1555 = vmatprep.subr.mxu0 0.0
        %1556 = vmatpush1.msra.mxu0 0.0
        %1557 = vmatprep.subr.mxu0 0.0
        %1558 = vmatpush1.msra.mxu0 0.0
        %1559 = vmatprep.subr.mxu0 0.0
        %1560 = vmatpush1.msra.mxu0 0.0
        %1561 = vmatprep.subr.mxu0 0.0
        %1562 = vmatpush1.msra.mxu0 0.0
        %1563 = vmatprep.subr.mxu0 0.0
        %1564 = vmatpush1.msra.mxu0 0.0
        %1565 = vmatprep.subr.mxu0 0.0
        %1566 = vmatpush1.msra.mxu0 0.0
        %1567 = vmatprep.subr.mxu0 0.0
        %1568 = vmatpush1.msra.mxu0 0.0
        %1569 = vmatprep.subr.mxu0 0.0
        %1570 = vmatpush1.msra.mxu0 0.0
        %1571 = vmatprep.subr.mxu0 0.0
        %1572 = vmatpush1.msra.mxu0 0.0
        %1573 = vmatprep.subr.mxu0 0.0
        %1574 = vmatpush1.msra.mxu0 0.0
        %1575 = vmatprep.subr.mxu0 0.0
        %1576 = vmatpush1.msra.mxu0 0.0
        %1577 = vmatprep.subr.mxu0 0.0
        %1578 = vmatpush1.msra.mxu0 0.0
        %1579 = vmatprep.subr.mxu0 0.0
        %1580 = vmatpush1.msra.mxu0 0.0
        %1581 = vmatprep.subr.mxu0 0.0
        %1582 = vmatpush1.msra.mxu0 0.0
        %1583 = vmatprep.subr.mxu0 0.0
        %1584 = vmatpush1.msra.mxu0 0.0
        %1585 = vmatprep.subr.mxu0 0.0
        %1586 = vmatpush1.msra.mxu0 0.0
        %1587 = vmatprep.subr.mxu0 0.0
        %1588 = vmatpush1.msra.mxu0 0.0
        %1589 = vmatprep.subr.mxu0 0.0
        %1590 = vmatpush1.msra.mxu0 0.0
        %1591 = vmatprep.subr.mxu0 0.0
        %1592 = vmatpush1.msra.mxu0 0.0
        %1593 = vmatprep.subr.mxu0 0.0
        %1594 = vmatpush1.msra.mxu0 0.0
        %1595 = vmatprep.subr.mxu0 0.0
        %1596 = vmatpush1.msra.mxu0 0.0
        %1597 = vmatprep.subr.mxu0 0.0
        %1598 = vmatpush1.msra.mxu0 0.0
        %1599 = vmatprep.subr.mxu0 0.0
        %1600 = vmatpush1.msra.mxu0 0.0
        %1601 = vmatprep.subr.mxu0 0.0
        %1602 = vmatpush1.msra.mxu0 0.0
        %1603 = vmatprep.subr.mxu0 0.0
        %1604 = vmatpush1.msra.mxu0 0.0
        %1605 = vmatprep.subr.mxu0 0.0
        %1606 = vmatpush1.msra.mxu0 0.0
        %1607 = vmatprep.subr.mxu0 0.0
        %1608 = vmatpush1.msra.mxu0 0.0
        %1609 = vmatprep.subr.mxu0 0.0
        %1610 = vmatpush1.msra.mxu0 0.0
        %1611 = vmatprep.subr.mxu0 0.0
        %1612 = vmatpush1.msra.mxu0 0.0
        %1613 = vmatprep.subr.mxu0 0.0
        %1614 = vmatpush1.msra.mxu0 0.0
        %1615 = vmatprep.mubr.f32.mxu0 0.0
        %1616 = vmatmul.mubr.f32.gmra.mrb[0].mxu0 %v719
        %v1617 = vpop.f32.mrb[0].mxu0
        %v1618 = vadd.f32 0.0, %v1617
        %v1619 = vpop.f32.mrb[0].mxu0
        %1620 = vdwg.mxu0
        %1621 = vmatprep.subr.mxu0 0.0
        %1622 = vmatpush1.msra.mxu0 %v620
        %1623 = vmatprep.subr.mxu0 0.0
        %1624 = vmatpush1.msra.mxu0 %v625
        %1625 = vmatprep.subr.mxu0 0.0
        %1626 = vmatpush1.msra.mxu0 0.0
        %1627 = vmatprep.subr.mxu0 0.0
        %1628 = vmatpush1.msra.mxu0 0.0
        %1629 = vmatprep.subr.mxu0 0.0
        %1630 = vmatpush1.msra.mxu0 0.0
        %1631 = vmatprep.subr.mxu0 0.0
        %1632 = vmatpush1.msra.mxu0 0.0
        %1633 = vmatprep.subr.mxu0 0.0
        %1634 = vmatpush1.msra.mxu0 0.0
        %1635 = vmatprep.subr.mxu0 0.0
        %1636 = vmatpush1.msra.mxu0 0.0
        %1637 = vmatprep.subr.mxu0 0.0
        %1638 = vmatpush1.msra.mxu0 0.0
        %1639 = vmatprep.subr.mxu0 0.0
        %1640 = vmatpush1.msra.mxu0 0.0
        %1641 = vmatprep.subr.mxu0 0.0
        %1642 = vmatpush1.msra.mxu0 0.0
        %1643 = vmatprep.subr.mxu0 0.0
        %1644 = vmatpush1.msra.mxu0 0.0
        %1645 = vmatprep.subr.mxu0 0.0
        %1646 = vmatpush1.msra.mxu0 0.0
        %1647 = vmatprep.subr.mxu0 0.0
        %1648 = vmatpush1.msra.mxu0 0.0
        %1649 = vmatprep.subr.mxu0 0.0
        %1650 = vmatpush1.msra.mxu0 0.0
        %1651 = vmatprep.subr.mxu0 0.0
        %1652 = vmatpush1.msra.mxu0 0.0
        %1653 = vmatprep.subr.mxu0 0.0
        %1654 = vmatpush1.msra.mxu0 0.0
        %1655 = vmatprep.subr.mxu0 0.0
        %1656 = vmatpush1.msra.mxu0 0.0
        %1657 = vmatprep.subr.mxu0 0.0
        %1658 = vmatpush1.msra.mxu0 0.0
        %1659 = vmatprep.subr.mxu0 0.0
        %1660 = vmatpush1.msra.mxu0 0.0
        %1661 = vmatprep.subr.mxu0 0.0
        %1662 = vmatpush1.msra.mxu0 0.0
        %1663 = vmatprep.subr.mxu0 0.0
        %1664 = vmatpush1.msra.mxu0 0.0
        %1665 = vmatprep.subr.mxu0 0.0
        %1666 = vmatpush1.msra.mxu0 0.0
        %1667 = vmatprep.subr.mxu0 0.0
        %1668 = vmatpush1.msra.mxu0 0.0
        %1669 = vmatprep.subr.mxu0 0.0
        %1670 = vmatpush1.msra.mxu0 0.0
        %1671 = vmatprep.subr.mxu0 0.0
        %1672 = vmatpush1.msra.mxu0 0.0
        %1673 = vmatprep.subr.mxu0 0.0
        %1674 = vmatpush1.msra.mxu0 0.0
        %1675 = vmatprep.subr.mxu0 0.0
        %1676 = vmatpush1.msra.mxu0 0.0
        %1677 = vmatprep.subr.mxu0 0.0
        %1678 = vmatpush1.msra.mxu0 0.0
        %1679 = vmatprep.subr.mxu0 0.0
        %1680 = vmatpush1.msra.mxu0 0.0
        %1681 = vmatprep.subr.mxu0 0.0
        %1682 = vmatpush1.msra.mxu0 0.0
        %1683 = vmatprep.subr.mxu0 0.0
        %1684 = vmatpush1.msra.mxu0 0.0
        %1685 = vmatprep.mubr.f32.mxu0 0.0
        %1686 = vmatmul.mubr.f32.gmra.mrb[0].mxu0 %v719
        %v1687 = vpop.f32.mrb[0].mxu0
        %v1688 = vadd.f32 0.0, %v1687
        %v1689 = vpop.f32.mrb[0].mxu0
        %1690 = vdwg.mxu0
        %1691 = vmatprep.subr.mxu0 0.0
        %1692 = vmatpush1.msra.mxu0 %v660
        %1693 = vmatprep.subr.mxu0 0.0
        %1694 = vmatpush1.msra.mxu0 %v665
        %1695 = vmatprep.subr.mxu0 0.0
        %1696 = vmatpush1.msra.mxu0 0.0
        %1697 = vmatprep.subr.mxu0 0.0
        %1698 = vmatpush1.msra.mxu0 0.0
        %1699 = vmatprep.subr.mxu0 0.0
        %1700 = vmatpush1.msra.mxu0 0.0
        %1701 = vmatprep.subr.mxu0 0.0
        %1702 = vmatpush1.msra.mxu0 0.0
        %1703 = vmatprep.subr.mxu0 0.0
        %1704 = vmatpush1.msra.mxu0 0.0
        %1705 = vmatprep.subr.mxu0 0.0
        %1706 = vmatpush1.msra.mxu0 0.0
        %1707 = vmatprep.subr.mxu0 0.0
        %1708 = vmatpush1.msra.mxu0 0.0
        %1709 = vmatprep.subr.mxu0 0.0
        %1710 = vmatpush1.msra.mxu0 0.0
        %1711 = vmatprep.subr.mxu0 0.0
        %1712 = vmatpush1.msra.mxu0 0.0
        %1713 = vmatprep.subr.mxu0 0.0
        %1714 = vmatpush1.msra.mxu0 0.0
        %1715 = vmatprep.subr.mxu0 0.0
        %1716 = vmatpush1.msra.mxu0 0.0
        %1717 = vmatprep.subr.mxu0 0.0
        %1718 = vmatpush1.msra.mxu0 0.0
        %1719 = vmatprep.subr.mxu0 0.0
        %1720 = vmatpush1.msra.mxu0 0.0
        %1721 = vmatprep.subr.mxu0 0.0
        %1722 = vmatpush1.msra.mxu0 0.0
        %1723 = vmatprep.subr.mxu0 0.0
        %1724 = vmatpush1.msra.mxu0 0.0
        %1725 = vmatprep.subr.mxu0 0.0
        %1726 = vmatpush1.msra.mxu0 0.0
        %1727 = vmatprep.subr.mxu0 0.0
        %1728 = vmatpush1.msra.mxu0 0.0
        %1729 = vmatprep.subr.mxu0 0.0
        %1730 = vmatpush1.msra.mxu0 0.0
        %1731 = vmatprep.subr.mxu0 0.0
        %1732 = vmatpush1.msra.mxu0 0.0
        %1733 = vmatprep.subr.mxu0 0.0
        %1734 = vmatpush1.msra.mxu0 0.0
        %1735 = vmatprep.subr.mxu0 0.0
        %1736 = vmatpush1.msra.mxu0 0.0
        %1737 = vmatprep.subr.mxu0 0.0
        %1738 = vmatpush1.msra.mxu0 0.0
        %1739 = vmatprep.subr.mxu0 0.0
        %1740 = vmatpush1.msra.mxu0 0.0
        %1741 = vmatprep.subr.mxu0 0.0
        %1742 = vmatpush1.msra.mxu0 0.0
        %1743 = vmatprep.subr.mxu0 0.0
        %1744 = vmatpush1.msra.mxu0 0.0
        %1745 = vmatprep.subr.mxu0 0.0
        %1746 = vmatpush1.msra.mxu0 0.0
        %1747 = vmatprep.subr.mxu0 0.0
        %1748 = vmatpush1.msra.mxu0 0.0
        %1749 = vmatprep.subr.mxu0 0.0
        %1750 = vmatpush1.msra.mxu0 0.0
        %1751 = vmatprep.subr.mxu0 0.0
        %1752 = vmatpush1.msra.mxu0 0.0
        %1753 = vmatprep.subr.mxu0 0.0
        %1754 = vmatpush1.msra.mxu0 0.0
        %1755 = vmatprep.mubr.f32.mxu0 0.0
        %1756 = vmatmul.mubr.f32.gmra.mrb[0].mxu0 %v719
        %v1757 = vpop.f32.mrb[0].mxu0
        %v1758 = vadd.f32 0.0, %v1757
        %v1759 = vpop.f32.mrb[0].mxu0
        %1760 = vdwg.mxu0
        %1761 = vmatprep.subr.mxu0 0.0
        %1762 = vmatpush1.msra.mxu0 %v700
        %1763 = vmatprep.subr.mxu0 0.0
        %1764 = vmatpush1.msra.mxu0 %v705
        %1765 = vmatprep.subr.mxu0 0.0
        %1766 = vmatpush1.msra.mxu0 0.0
        %1767 = vmatprep.subr.mxu0 0.0
        %1768 = vmatpush1.msra.mxu0 0.0
        %1769 = vmatprep.subr.mxu0 0.0
        %1770 = vmatpush1.msra.mxu0 0.0
        %1771 = vmatprep.subr.mxu0 0.0
        %1772 = vmatpush1.msra.mxu0 0.0
        %1773 = vmatprep.subr.mxu0 0.0
        %1774 = vmatpush1.msra.mxu0 0.0
        %1775 = vmatprep.subr.mxu0 0.0
        %1776 = vmatpush1.msra.mxu0 0.0
        %1777 = vmatprep.subr.mxu0 0.0
        %1778 = vmatpush1.msra.mxu0 0.0
        %1779 = vmatprep.subr.mxu0 0.0
        %1780 = vmatpush1.msra.mxu0 0.0
        %1781 = vmatprep.subr.mxu0 0.0
        %1782 = vmatpush1.msra.mxu0 0.0
        %1783 = vmatprep.subr.mxu0 0.0
        %1784 = vmatpush1.msra.mxu0 0.0
        %1785 = vmatprep.subr.mxu0 0.0
        %1786 = vmatpush1.msra.mxu0 0.0
        %1787 = vmatprep.subr.mxu0 0.0
        %1788 = vmatpush1.msra.mxu0 0.0
        %1789 = vmatprep.subr.mxu0 0.0
        %1790 = vmatpush1.msra.mxu0 0.0
        %1791 = vmatprep.subr.mxu0 0.0
        %1792 = vmatpush1.msra.mxu0 0.0
        %1793 = vmatprep.subr.mxu0 0.0
        %1794 = vmatpush1.msra.mxu0 0.0
        %1795 = vmatprep.subr.mxu0 0.0
        %1796 = vmatpush1.msra.mxu0 0.0
        %1797 = vmatprep.subr.mxu0 0.0
        %1798 = vmatpush1.msra.mxu0 0.0
        %1799 = vmatprep.subr.mxu0 0.0
        %1800 = vmatpush1.msra.mxu0 0.0
        %1801 = vmatprep.subr.mxu0 0.0
        %1802 = vmatpush1.msra.mxu0 0.0
        %1803 = vmatprep.subr.mxu0 0.0
        %1804 = vmatpush1.msra.mxu0 0.0
        %1805 = vmatprep.subr.mxu0 0.0
        %1806 = vmatpush1.msra.mxu0 0.0
        %1807 = vmatprep.subr.mxu0 0.0
        %1808 = vmatpush1.msra.mxu0 0.0
        %1809 = vmatprep.subr.mxu0 0.0
        %1810 = vmatpush1.msra.mxu0 0.0
        %1811 = vmatprep.subr.mxu0 0.0
        %1812 = vmatpush1.msra.mxu0 0.0
        %1813 = vmatprep.subr.mxu0 0.0
        %1814 = vmatpush1.msra.mxu0 0.0
        %1815 = vmatprep.subr.mxu0 0.0
        %1816 = vmatpush1.msra.mxu0 0.0
        %1817 = vmatprep.subr.mxu0 0.0
        %1818 = vmatpush1.msra.mxu0 0.0
        %1819 = vmatprep.subr.mxu0 0.0
        %1820 = vmatpush1.msra.mxu0 0.0
        %1821 = vmatprep.subr.mxu0 0.0
        %1822 = vmatpush1.msra.mxu0 0.0
        %1823 = vmatprep.subr.mxu0 0.0
        %1824 = vmatpush1.msra.mxu0 0.0
        %1825 = vmatprep.mubr.f32.mxu0 0.0
        %1826 = vmatmul.mubr.f32.gmra.mrb[0].mxu0 %v719
        %v1827 = vpop.f32.mrb[0].mxu0
        %v1828 = vadd.f32 0.0, %v1827
        %v1829 = vpop.f32.mrb[0].mxu0
        %1830 = vdwg.mxu0
        %v1831 = vmul.f32 %v1548, %v1548
        %v1832 = vmul.f32 %v1618, %v1618
        %v1833 = vmul.f32 %v1548, %v1618
        %v1834 = vsub.f32 %v1688, %v1831
        %v1835 = vsub.f32 %v1758, %v1832
        %v1836 = vsub.f32 %v1828, %v1833
        %v1837 = vmul.f32 %v1836, 2.0
        %v1838 = vadd.f32 %v1837, %v1078
        %v1839 = vadd.f32 %v1834, %v1835
        %v1840 = vadd.f32 %v1839, %v1078
        %v1841 = vmul.f32 %v1833, 2.0
        %v1842 = vadd.f32 %v1841, %v1083
        %v1843 = vmul.f32 %v1842, %v1838
        %v1844 = vadd.f32 %v1831, %v1832
        %v1845 = vadd.f32 %v1844, %v1083
        %v1846 = vmul.f32 %v1845, %v1840
        %v1847 = vrcp.pop %v1846
        %v1848 = vmul.f32 %v1846, %v1847
        %v1849 = vsub.f32 2.0, %v1848
        %v1850 = vmul.f32 %v1847, %v1849
        %v1851 = vmul.f32 %v1843, %v1850
        %v1852 = vsel %vm1094, %v1851, 0.0
        %v1853 = vrot.slane %v1852, 4
        %v1854 = vadd.f32 %v1852, %v1853
        %v1855 = vrot.slane %v1854, 2
        %v1856 = vadd.f32 %v1854, %v1855
        %v1857 = vrot.slane %v1856, 1
        %v1858 = vadd.f32 %v1856, %v1857
        %v1859 = vadd.f32 %v1480, %v1858
        %1860 = vmatprep.subr.mxu0 0.0
        %1861 = vmatpush1.msra.mxu0 %v550
        %1862 = vmatprep.subr.mxu0 0.0
        %1863 = vmatpush1.msra.mxu0 %v555
        %1864 = vmatprep.subr.mxu0 0.0
        %1865 = vmatpush1.msra.mxu0 0.0
        %1866 = vmatprep.subr.mxu0 0.0
        %1867 = vmatpush1.msra.mxu0 0.0
        %1868 = vmatprep.subr.mxu0 0.0
        %1869 = vmatpush1.msra.mxu0 0.0
        %1870 = vmatprep.subr.mxu0 0.0
        %1871 = vmatpush1.msra.mxu0 0.0
        %1872 = vmatprep.subr.mxu0 0.0
        %1873 = vmatpush1.msra.mxu0 0.0
        %1874 = vmatprep.subr.mxu0 0.0
        %1875 = vmatpush1.msra.mxu0 0.0
        %1876 = vmatprep.subr.mxu0 0.0
        %1877 = vmatpush1.msra.mxu0 0.0
        %1878 = vmatprep.subr.mxu0 0.0
        %1879 = vmatpush1.msra.mxu0 0.0
        %1880 = vmatprep.subr.mxu0 0.0
        %1881 = vmatpush1.msra.mxu0 0.0
        %1882 = vmatprep.subr.mxu0 0.0
        %1883 = vmatpush1.msra.mxu0 0.0
        %1884 = vmatprep.subr.mxu0 0.0
        %1885 = vmatpush1.msra.mxu0 0.0
        %1886 = vmatprep.subr.mxu0 0.0
        %1887 = vmatpush1.msra.mxu0 0.0
        %1888 = vmatprep.subr.mxu0 0.0
        %1889 = vmatpush1.msra.mxu0 0.0
        %1890 = vmatprep.subr.mxu0 0.0
        %1891 = vmatpush1.msra.mxu0 0.0
        %1892 = vmatprep.subr.mxu0 0.0
        %1893 = vmatpush1.msra.mxu0 0.0
        %1894 = vmatprep.subr.mxu0 0.0
        %1895 = vmatpush1.msra.mxu0 0.0
        %1896 = vmatprep.subr.mxu0 0.0
        %1897 = vmatpush1.msra.mxu0 0.0
        %1898 = vmatprep.subr.mxu0 0.0
        %1899 = vmatpush1.msra.mxu0 0.0
        %1900 = vmatprep.subr.mxu0 0.0
        %1901 = vmatpush1.msra.mxu0 0.0
        %1902 = vmatprep.subr.mxu0 0.0
        %1903 = vmatpush1.msra.mxu0 0.0
        %1904 = vmatprep.subr.mxu0 0.0
        %1905 = vmatpush1.msra.mxu0 0.0
        %1906 = vmatprep.subr.mxu0 0.0
        %1907 = vmatpush1.msra.mxu0 0.0
        %1908 = vmatprep.subr.mxu0 0.0
        %1909 = vmatpush1.msra.mxu0 0.0
        %1910 = vmatprep.subr.mxu0 0.0
        %1911 = vmatpush1.msra.mxu0 0.0
        %1912 = vmatprep.subr.mxu0 0.0
        %1913 = vmatpush1.msra.mxu0 0.0
        %1914 = vmatprep.subr.mxu0 0.0
        %1915 = vmatpush1.msra.mxu0 0.0
        %1916 = vmatprep.subr.mxu0 0.0
        %1917 = vmatpush1.msra.mxu0 0.0
        %1918 = vmatprep.subr.mxu0 0.0
        %1919 = vmatpush1.msra.mxu0 0.0
        %1920 = vmatprep.subr.mxu0 0.0
        %1921 = vmatpush1.msra.mxu0 0.0
        %1922 = vmatprep.subr.mxu0 0.0
        %1923 = vmatpush1.msra.mxu0 0.0
        %1924 = vmatprep.mubr.f32.mxu0 0.0
        %1925 = vmatmul.mubr.f32.gmra.mrb[0].mxu0 %v719
        %v1926 = vpop.f32.mrb[0].mxu0
        %v1927 = vadd.f32 0.0, %v1926
        %v1928 = vpop.f32.mrb[0].mxu0
        %1929 = vdwg.mxu0
        %1930 = vmatprep.subr.mxu0 0.0
        %1931 = vmatpush1.msra.mxu0 %v590
        %1932 = vmatprep.subr.mxu0 0.0
        %1933 = vmatpush1.msra.mxu0 %v595
        %1934 = vmatprep.subr.mxu0 0.0
        %1935 = vmatpush1.msra.mxu0 0.0
        %1936 = vmatprep.subr.mxu0 0.0
        %1937 = vmatpush1.msra.mxu0 0.0
        %1938 = vmatprep.subr.mxu0 0.0
        %1939 = vmatpush1.msra.mxu0 0.0
        %1940 = vmatprep.subr.mxu0 0.0
        %1941 = vmatpush1.msra.mxu0 0.0
        %1942 = vmatprep.subr.mxu0 0.0
        %1943 = vmatpush1.msra.mxu0 0.0
        %1944 = vmatprep.subr.mxu0 0.0
        %1945 = vmatpush1.msra.mxu0 0.0
        %1946 = vmatprep.subr.mxu0 0.0
        %1947 = vmatpush1.msra.mxu0 0.0
        %1948 = vmatprep.subr.mxu0 0.0
        %1949 = vmatpush1.msra.mxu0 0.0
        %1950 = vmatprep.subr.mxu0 0.0
        %1951 = vmatpush1.msra.mxu0 0.0
        %1952 = vmatprep.subr.mxu0 0.0
        %1953 = vmatpush1.msra.mxu0 0.0
        %1954 = vmatprep.subr.mxu0 0.0
        %1955 = vmatpush1.msra.mxu0 0.0
        %1956 = vmatprep.subr.mxu0 0.0
        %1957 = vmatpush1.msra.mxu0 0.0
        %1958 = vmatprep.subr.mxu0 0.0
        %1959 = vmatpush1.msra.mxu0 0.0
        %1960 = vmatprep.subr.mxu0 0.0
        %1961 = vmatpush1.msra.mxu0 0.0
        %1962 = vmatprep.subr.mxu0 0.0
        %1963 = vmatpush1.msra.mxu0 0.0
        %1964 = vmatprep.subr.mxu0 0.0
        %1965 = vmatpush1.msra.mxu0 0.0
        %1966 = vmatprep.subr.mxu0 0.0
        %1967 = vmatpush1.msra.mxu0 0.0
        %1968 = vmatprep.subr.mxu0 0.0
        %1969 = vmatpush1.msra.mxu0 0.0
        %1970 = vmatprep.subr.mxu0 0.0
        %1971 = vmatpush1.msra.mxu0 0.0
        %1972 = vmatprep.subr.mxu0 0.0
        %1973 = vmatpush1.msra.mxu0 0.0
        %1974 = vmatprep.subr.mxu0 0.0
        %1975 = vmatpush1.msra.mxu0 0.0
        %1976 = vmatprep.subr.mxu0 0.0
        %1977 = vmatpush1.msra.mxu0 0.0
        %1978 = vmatprep.subr.mxu0 0.0
        %1979 = vmatpush1.msra.mxu0 0.0
        %1980 = vmatprep.subr.mxu0 0.0
        %1981 = vmatpush1.msra.mxu0 0.0
        %1982 = vmatprep.subr.mxu0 0.0
        %1983 = vmatpush1.msra.mxu0 0.0
        %1984 = vmatprep.subr.mxu0 0.0
        %1985 = vmatpush1.msra.mxu0 0.0
        %1986 = vmatprep.subr.mxu0 0.0
        %1987 = vmatpush1.msra.mxu0 0.0
        %1988 = vmatprep.subr.mxu0 0.0
        %1989 = vmatpush1.msra.mxu0 0.0
        %1990 = vmatprep.subr.mxu0 0.0
        %1991 = vmatpush1.msra.mxu0 0.0
        %1992 = vmatprep.subr.mxu0 0.0
        %1993 = vmatpush1.msra.mxu0 0.0
        %1994 = vmatprep.mubr.f32.mxu0 0.0
        %1995 = vmatmul.mubr.f32.gmra.mrb[0].mxu0 %v719
        %v1996 = vpop.f32.mrb[0].mxu0
        %v1997 = vadd.f32 0.0, %v1996
        %v1998 = vpop.f32.mrb[0].mxu0
        %1999 = vdwg.mxu0
        %2000 = vmatprep.subr.mxu0 0.0
        %2001 = vmatpush1.msra.mxu0 %v630
        %2002 = vmatprep.subr.mxu0 0.0
        %2003 = vmatpush1.msra.mxu0 %v635
        %2004 = vmatprep.subr.mxu0 0.0
        %2005 = vmatpush1.msra.mxu0 0.0
        %2006 = vmatprep.subr.mxu0 0.0
        %2007 = vmatpush1.msra.mxu0 0.0
        %2008 = vmatprep.subr.mxu0 0.0
        %2009 = vmatpush1.msra.mxu0 0.0
        %2010 = vmatprep.subr.mxu0 0.0
        %2011 = vmatpush1.msra.mxu0 0.0
        %2012 = vmatprep.subr.mxu0 0.0
        %2013 = vmatpush1.msra.mxu0 0.0
        %2014 = vmatprep.subr.mxu0 0.0
        %2015 = vmatpush1.msra.mxu0 0.0
        %2016 = vmatprep.subr.mxu0 0.0
        %2017 = vmatpush1.msra.mxu0 0.0
        %2018 = vmatprep.subr.mxu0 0.0
        %2019 = vmatpush1.msra.mxu0 0.0
        %2020 = vmatprep.subr.mxu0 0.0
        %2021 = vmatpush1.msra.mxu0 0.0
        %2022 = vmatprep.subr.mxu0 0.0
        %2023 = vmatpush1.msra.mxu0 0.0
        %2024 = vmatprep.subr.mxu0 0.0
        %2025 = vmatpush1.msra.mxu0 0.0
        %2026 = vmatprep.subr.mxu0 0.0
        %2027 = vmatpush1.msra.mxu0 0.0
        %2028 = vmatprep.subr.mxu0 0.0
        %2029 = vmatpush1.msra.mxu0 0.0
        %2030 = vmatprep.subr.mxu0 0.0
        %2031 = vmatpush1.msra.mxu0 0.0
        %2032 = vmatprep.subr.mxu0 0.0
        %2033 = vmatpush1.msra.mxu0 0.0
        %2034 = vmatprep.subr.mxu0 0.0
        %2035 = vmatpush1.msra.mxu0 0.0
        %2036 = vmatprep.subr.mxu0 0.0
        %2037 = vmatpush1.msra.mxu0 0.0
        %2038 = vmatprep.subr.mxu0 0.0
        %2039 = vmatpush1.msra.mxu0 0.0
        %2040 = vmatprep.subr.mxu0 0.0
        %2041 = vmatpush1.msra.mxu0 0.0
        %2042 = vmatprep.subr.mxu0 0.0
        %2043 = vmatpush1.msra.mxu0 0.0
        %2044 = vmatprep.subr.mxu0 0.0
        %2045 = vmatpush1.msra.mxu0 0.0
        %2046 = vmatprep.subr.mxu0 0.0
        %2047 = vmatpush1.msra.mxu0 0.0
        %2048 = vmatprep.subr.mxu0 0.0
        %2049 = vmatpush1.msra.mxu0 0.0
        %2050 = vmatprep.subr.mxu0 0.0
        %2051 = vmatpush1.msra.mxu0 0.0
        %2052 = vmatprep.subr.mxu0 0.0
        %2053 = vmatpush1.msra.mxu0 0.0
        %2054 = vmatprep.subr.mxu0 0.0
        %2055 = vmatpush1.msra.mxu0 0.0
        %2056 = vmatprep.subr.mxu0 0.0
        %2057 = vmatpush1.msra.mxu0 0.0
        %2058 = vmatprep.subr.mxu0 0.0
        %2059 = vmatpush1.msra.mxu0 0.0
        %2060 = vmatprep.subr.mxu0 0.0
        %2061 = vmatpush1.msra.mxu0 0.0
        %2062 = vmatprep.subr.mxu0 0.0
        %2063 = vmatpush1.msra.mxu0 0.0
        %2064 = vmatprep.mubr.f32.mxu0 0.0
        %2065 = vmatmul.mubr.f32.gmra.mrb[0].mxu0 %v719
        %v2066 = vpop.f32.mrb[0].mxu0
        %v2067 = vadd.f32 0.0, %v2066
        %v2068 = vpop.f32.mrb[0].mxu0
        %2069 = vdwg.mxu0
        %2070 = vmatprep.subr.mxu0 0.0
        %2071 = vmatpush1.msra.mxu0 %v670
        %2072 = vmatprep.subr.mxu0 0.0
        %2073 = vmatpush1.msra.mxu0 %v675
        %2074 = vmatprep.subr.mxu0 0.0
        %2075 = vmatpush1.msra.mxu0 0.0
        %2076 = vmatprep.subr.mxu0 0.0
        %2077 = vmatpush1.msra.mxu0 0.0
        %2078 = vmatprep.subr.mxu0 0.0
        %2079 = vmatpush1.msra.mxu0 0.0
        %2080 = vmatprep.subr.mxu0 0.0
        %2081 = vmatpush1.msra.mxu0 0.0
        %2082 = vmatprep.subr.mxu0 0.0
        %2083 = vmatpush1.msra.mxu0 0.0
        %2084 = vmatprep.subr.mxu0 0.0
        %2085 = vmatpush1.msra.mxu0 0.0
        %2086 = vmatprep.subr.mxu0 0.0
        %2087 = vmatpush1.msra.mxu0 0.0
        %2088 = vmatprep.subr.mxu0 0.0
        %2089 = vmatpush1.msra.mxu0 0.0
        %2090 = vmatprep.subr.mxu0 0.0
        %2091 = vmatpush1.msra.mxu0 0.0
        %2092 = vmatprep.subr.mxu0 0.0
        %2093 = vmatpush1.msra.mxu0 0.0
        %2094 = vmatprep.subr.mxu0 0.0
        %2095 = vmatpush1.msra.mxu0 0.0
        %2096 = vmatprep.subr.mxu0 0.0
        %2097 = vmatpush1.msra.mxu0 0.0
        %2098 = vmatprep.subr.mxu0 0.0
        %2099 = vmatpush1.msra.mxu0 0.0
        %2100 = vmatprep.subr.mxu0 0.0
        %2101 = vmatpush1.msra.mxu0 0.0
        %2102 = vmatprep.subr.mxu0 0.0
        %2103 = vmatpush1.msra.mxu0 0.0
        %2104 = vmatprep.subr.mxu0 0.0
        %2105 = vmatpush1.msra.mxu0 0.0
        %2106 = vmatprep.subr.mxu0 0.0
        %2107 = vmatpush1.msra.mxu0 0.0
        %2108 = vmatprep.subr.mxu0 0.0
        %2109 = vmatpush1.msra.mxu0 0.0
        %2110 = vmatprep.subr.mxu0 0.0
        %2111 = vmatpush1.msra.mxu0 0.0
        %2112 = vmatprep.subr.mxu0 0.0
        %2113 = vmatpush1.msra.mxu0 0.0
        %2114 = vmatprep.subr.mxu0 0.0
        %2115 = vmatpush1.msra.mxu0 0.0
        %2116 = vmatprep.subr.mxu0 0.0
        %2117 = vmatpush1.msra.mxu0 0.0
        %2118 = vmatprep.subr.mxu0 0.0
        %2119 = vmatpush1.msra.mxu0 0.0
        %2120 = vmatprep.subr.mxu0 0.0
        %2121 = vmatpush1.msra.mxu0 0.0
        %2122 = vmatprep.subr.mxu0 0.0
        %2123 = vmatpush1.msra.mxu0 0.0
        %2124 = vmatprep.subr.mxu0 0.0
        %2125 = vmatpush1.msra.mxu0 0.0
        %2126 = vmatprep.subr.mxu0 0.0
        %2127 = vmatpush1.msra.mxu0 0.0
        %2128 = vmatprep.subr.mxu0 0.0
        %2129 = vmatpush1.msra.mxu0 0.0
        %2130 = vmatprep.subr.mxu0 0.0
        %2131 = vmatpush1.msra.mxu0 0.0
        %2132 = vmatprep.subr.mxu0 0.0
        %2133 = vmatpush1.msra.mxu0 0.0
        %2134 = vmatprep.mubr.f32.mxu0 0.0
        %2135 = vmatmul.mubr.f32.gmra.mrb[0].mxu0 %v719
        %v2136 = vpop.f32.mrb[0].mxu0
        %v2137 = vadd.f32 0.0, %v2136
        %v2138 = vpop.f32.mrb[0].mxu0
        %2139 = vdwg.mxu0
        %2140 = vmatprep.subr.mxu0 0.0
        %2141 = vmatpush1.msra.mxu0 %v710
        %2142 = vmatprep.subr.mxu0 0.0
        %2143 = vmatpush1.msra.mxu0 %v715
        %2144 = vmatprep.subr.mxu0 0.0
        %2145 = vmatpush1.msra.mxu0 0.0
        %2146 = vmatprep.subr.mxu0 0.0
        %2147 = vmatpush1.msra.mxu0 0.0
        %2148 = vmatprep.subr.mxu0 0.0
        %2149 = vmatpush1.msra.mxu0 0.0
        %2150 = vmatprep.subr.mxu0 0.0
        %2151 = vmatpush1.msra.mxu0 0.0
        %2152 = vmatprep.subr.mxu0 0.0
        %2153 = vmatpush1.msra.mxu0 0.0
        %2154 = vmatprep.subr.mxu0 0.0
        %2155 = vmatpush1.msra.mxu0 0.0
        %2156 = vmatprep.subr.mxu0 0.0
        %2157 = vmatpush1.msra.mxu0 0.0
        %2158 = vmatprep.subr.mxu0 0.0
        %2159 = vmatpush1.msra.mxu0 0.0
        %2160 = vmatprep.subr.mxu0 0.0
        %2161 = vmatpush1.msra.mxu0 0.0
        %2162 = vmatprep.subr.mxu0 0.0
        %2163 = vmatpush1.msra.mxu0 0.0
        %2164 = vmatprep.subr.mxu0 0.0
        %2165 = vmatpush1.msra.mxu0 0.0
        %2166 = vmatprep.subr.mxu0 0.0
        %2167 = vmatpush1.msra.mxu0 0.0
        %2168 = vmatprep.subr.mxu0 0.0
        %2169 = vmatpush1.msra.mxu0 0.0
        %2170 = vmatprep.subr.mxu0 0.0
        %2171 = vmatpush1.msra.mxu0 0.0
        %2172 = vmatprep.subr.mxu0 0.0
        %2173 = vmatpush1.msra.mxu0 0.0
        %2174 = vmatprep.subr.mxu0 0.0
        %2175 = vmatpush1.msra.mxu0 0.0
        %2176 = vmatprep.subr.mxu0 0.0
        %2177 = vmatpush1.msra.mxu0 0.0
        %2178 = vmatprep.subr.mxu0 0.0
        %2179 = vmatpush1.msra.mxu0 0.0
        %2180 = vmatprep.subr.mxu0 0.0
        %2181 = vmatpush1.msra.mxu0 0.0
        %2182 = vmatprep.subr.mxu0 0.0
        %2183 = vmatpush1.msra.mxu0 0.0
        %2184 = vmatprep.subr.mxu0 0.0
        %2185 = vmatpush1.msra.mxu0 0.0
        %2186 = vmatprep.subr.mxu0 0.0
        %2187 = vmatpush1.msra.mxu0 0.0
        %2188 = vmatprep.subr.mxu0 0.0
        %2189 = vmatpush1.msra.mxu0 0.0
        %2190 = vmatprep.subr.mxu0 0.0
        %2191 = vmatpush1.msra.mxu0 0.0
        %2192 = vmatprep.subr.mxu0 0.0
        %2193 = vmatpush1.msra.mxu0 0.0
        %2194 = vmatprep.subr.mxu0 0.0
        %2195 = vmatpush1.msra.mxu0 0.0
        %2196 = vmatprep.subr.mxu0 0.0
        %2197 = vmatpush1.msra.mxu0 0.0
        %2198 = vmatprep.subr.mxu0 0.0
        %2199 = vmatpush1.msra.mxu0 0.0
        %2200 = vmatprep.subr.mxu0 0.0
        %2201 = vmatpush1.msra.mxu0 0.0
        %2202 = vmatprep.subr.mxu0 0.0
        %2203 = vmatpush1.msra.mxu0 0.0
        %2204 = vmatprep.mubr.f32.mxu0 0.0
        %2205 = vmatmul.mubr.f32.gmra.mrb[0].mxu0 %v719
        %v2206 = vpop.f32.mrb[0].mxu0
        %v2207 = vadd.f32 0.0, %v2206
        %v2208 = vpop.f32.mrb[0].mxu0
        %2209 = vdwg.mxu0
        %v2210 = vmul.f32 %v1927, %v1927
        %v2211 = vmul.f32 %v1997, %v1997
        %v2212 = vmul.f32 %v1927, %v1997
        %v2213 = vsub.f32 %v2067, %v2210
        %v2214 = vsub.f32 %v2137, %v2211
        %v2215 = vsub.f32 %v2207, %v2212
        %v2216 = vmul.f32 %v2215, 2.0
        %v2217 = vadd.f32 %v2216, %v1078
        %v2218 = vadd.f32 %v2213, %v2214
        %v2219 = vadd.f32 %v2218, %v1078
        %v2220 = vmul.f32 %v2212, 2.0
        %v2221 = vadd.f32 %v2220, %v1083
        %v2222 = vmul.f32 %v2221, %v2217
        %v2223 = vadd.f32 %v2210, %v2211
        %v2224 = vadd.f32 %v2223, %v1083
        %v2225 = vmul.f32 %v2224, %v2219
        %v2226 = vrcp.pop %v2225
        %v2227 = vmul.f32 %v2225, %v2226
        %v2228 = vsub.f32 2.0, %v2227
        %v2229 = vmul.f32 %v2226, %v2228
        %v2230 = vmul.f32 %v2222, %v2229
        %v2231 = vsel %vm1094, %v2230, 0.0
        %v2232 = vrot.slane %v2231, 4
        %v2233 = vadd.f32 %v2231, %v2232
        %v2234 = vrot.slane %v2233, 2
        %v2235 = vadd.f32 %v2233, %v2234
        %v2236 = vrot.slane %v2235, 1
        %v2237 = vadd.f32 %v2235, %v2236
        %v2238 = vadd.f32 %v1859, %v2237
        %vm2239 = vcmask 40960
        %2240 = vst.msk [vmem:[%s280] sm:$0x1] %vm2239, %v2238
        %s2241 = sand.u32 %s124, 1
        %s2242 = scalar_lea.sflag [#allocation6], %s2241
        %s2243 = sand.u32 %s124, 1
        %s2244 = scalar_lea.vmem [#allocation11], %s2243
        // Predicated region
        $region53: #{ssim_pallas.1} parent=35 // pred_check
          %p2245 = pneg %p134
        $region54: #{ssim_pallas.1} parent=35 // pred_check_branch
          %2247 = sbr.rel (%p2245) target = $region56
        $region55: #{ssim_pallas.1} parent=35 // pred_region
          %s2249 = ssub.s32 16, 16
          %2250 = vsyncadd %s2242, %s2249
          %s2251 = smul.addr %s22, 16
          %s2252 = scalar_lea.hbm %s5, %s2251
          %s2254 = sshll.u32 %s2244, 4
          %s2255 = int_to_ptr.vmem [resolvable:$true] %s2254
          %2257 = dma.vmem_to_hbm [thread:$0]  %s2255, 16, %s2252, %s2242
        $region56: #{ssim_pallas.1} parent=35 // pred_fallthru
          _
      $region36: #{ssim_pallas.1} parent=5 // pred_fallthru
        _
      %p2258 = scmp.le.s32.totalorder 2, %s17
      // Predicated region
      $region57: #{ssim_pallas.1} parent=5 // pred_check
        %p2259 = pneg %p2258
      $region58: #{ssim_pallas.1} parent=5 // pred_check_branch
        %2261 = sbr.rel (%p2259) target = $region60
      $region59: #{ssim_pallas.1} parent=5 // pred_region
        %s2262 = ssub.s32 %s17, 2
        // Predicated region
        $region61: #{ssim_pallas.1} parent=59 // pred_check
          %p2263 = pneg %p140
        $region62: #{ssim_pallas.1} parent=59 // pred_check_branch
          %2265 = sbr.rel (%p2263) target = $region64
        $region63: #{ssim_pallas.1} parent=59 // pred_region
          %s2266 = sand.u32 %s125, 1
          %s2267 = scalar_lea.sflag [#allocation6], %s2266
          %s2268 = sand.u32 %s125, 1
          %s2269 = scalar_lea.vmem [#allocation11], %s2268
          %2270 = dma.done %s2267, 16
        $region64: #{ssim_pallas.1} parent=59 // pred_fallthru
          _
      $region60: #{ssim_pallas.1} parent=5 // pred_fallthru
        _
    $region6: #{ssim_pallas.1} parent=1 // loop_footer
      %s21 = sadd.s32 1, %s17
    $region7: #{ssim_pallas.1} parent=1 // loop_footer_branch
      %16 = sbr.rel target = $region3
    $region8: #{ssim_pallas.1} parent=1 // loop_exit
      _
    %2271 = vsyncpa [#allocation5], 1
    %s2272 = scalar_lea.sflag [#allocation5], 1
    %2273 = vsyncpa %s2272, 1
    %2274 = vsyncpa [#allocation8], 1
    %2275 = vsyncpa [#allocation6], 1
    %s2276 = scalar_lea.sflag [#allocation6], 1
    %2277 = vsyncpa %s2276, 1

</llo_original>
